<compile_context>
chip_gen: v7x
topology: tpu7x:2x2x1
jax: 0.10.0
libtpu: 0.0.40
codegen_flags: <defaults>
</compile_context>

<pallas_src>
import functools

import jax
import jax.numpy as jnp
from jax.experimental import pallas as pl
from jax.experimental.pallas import tpu as pltpu


def _recip(x, approx):
    if approx:
        return pl.reciprocal(x, approx=True)       # EUP slot, ~free
    return 1.0 / x


def _squash_lastdim(t, approx):
    # squash(t) = (|t|^2 / (1 + |t|^2)) * t / |t|  == t * |t| / (1 + |t|^2)
    sq = jnp.sum(t * t, axis=-1, keepdims=True)
    if approx:
        # sqrt(sq) as sq * rsqrt(sq); 1/(1+sq) on the EUP.
        return t * (sq * jax.lax.rsqrt(sq)) * pl.reciprocal(1.0 + sq, approx=True)
    return (sq / (1.0 + sq)) * t / jnp.sqrt(sq)


def _capsule_kernel(x_ref, w_ref, out_ref, *, num_iterations, use_approx):
    # x_ref : (TB, Cin, R)            batch tile, shared by all capsules
    # w_ref : (N, Cin, Cout, R)       full routing weights (same every step)
    # out_ref: (TB, N * Cout)         lane-dense output slab
    x = x_ref[...]                                   # (TB, Cin, R) f32
    tb, cin, r = x.shape
    n_caps = w_ref.shape[0]
    inv_r = jnp.float32(1.0 / r)

    caps = []
    for n in range(n_caps):
        w_n = w_ref[n]                               # (Cin, Cout, R)

        # priors[b, o, r] = sum_c x[b, c, r] * w[c, o, r]
        # Lane-dense VPU multiply-accumulate over Cin (no MXU micro-matmuls).
        priors = x[:, 0, None, :] * w_n[0][None, :, :]          # (TB, Cout, R)
        for c in range(1, cin):
            priors = priors + x[:, c, None, :] * w_n[c][None, :, :]

        logits = None                                # (TB, R) once set
        outputs = None
        for i in range(num_iterations):
            if i == 0:
                # Zero logits -> softmax over R is exactly uniform (1/R):
                # skip max/exp/sum entirely.
                s = jnp.sum(priors, axis=-1) * inv_r             # (TB, Cout)
            else:
                m = jnp.max(logits, axis=-1, keepdims=True)      # (TB, 1)
                e = jnp.exp(logits - m)                          # (TB, R)
                denom = jnp.sum(e, axis=-1, keepdims=True)       # (TB, 1)
                probs = e * _recip(denom, use_approx)            # (TB, R)
                s = jnp.sum(probs[:, None, :] * priors, axis=-1)  # (TB, Cout)

            outputs = _squash_lastdim(s, use_approx)             # (TB, Cout)

            if i != num_iterations - 1:
                # delta[b, r] = sum_o priors[b, o, r] * outputs[b, o]
                delta = jnp.sum(priors * outputs[:, :, None], axis=1)  # (TB, R)
                logits = delta if logits is None else logits + delta

        caps.append(outputs)

    # One lane-dense store of all capsules' outputs.
    out_ref[...] = jnp.concatenate(caps, axis=-1).astype(out_ref.dtype)


def _step_vmem_bytes(tb, n, r, cin, cout):
    """Rough per-grid-step VMEM footprint (f32, lane-padded), for tile sizing."""
    lane_r = -(-r // 128) * 128
    lane_out = -(-(n * cout) // 128) * 128
    x_blk = 2 * tb * cin * lane_r * 4          # double-buffered x tile
    out_blk = 2 * tb * lane_out * 4            # double-buffered output tile
    w_blk = 2 * n * cin * cout * lane_r * 4    # double-buffered weights
    priors = tb * cout * lane_r * 4            # per-capsule intermediate
    state = 4 * tb * lane_r * 4                # logits / exp / probs / delta
    return x_blk + out_blk + w_blk + priors + state


def _pick_batch_tile(b, n, r, cin, cout, budget_bytes=24 * 1024 * 1024):
    if b <= 128:
        return b                               # single full-batch block
    tb = 128
    while tb > 8 and _step_vmem_bytes(tb, n, r, cin, cout) > budget_bytes:
        tb //= 2
    return tb


def capsule_layer_routing(x, route_weights, num_iterations=3, use_approx=True):
    """x: (B, R, C_in) f32, route_weights: (N, R, C_in, C_out) f32.

    Returns (N, B, 1, 1, C_out), matching the PyTorch forward."""
    B, R, Cin = x.shape
    N, R2, Cin2, Cout = route_weights.shape
    assert R == R2 and Cin == Cin2

    # Put R on the lane (last) dimension; done once, outside the kernel.
    x_t = jnp.transpose(x, (0, 2, 1)).astype(jnp.float32)                # (B, Cin, R)
    w_t = jnp.transpose(route_weights, (0, 2, 3, 1)).astype(jnp.float32)  # (N, Cin, Cout, R)

    TB = _pick_batch_tile(B, N, R, Cin, Cout)
    B_pad = -(-B // TB) * TB
    if B_pad != B:
        x_t = jnp.pad(x_t, ((0, B_pad - B), (0, 0), (0, 0)))

    est = _step_vmem_bytes(TB, N, R, Cin, Cout)
    vmem_limit = int(min(max(32 * 1024 * 1024, 1.5 * est), 64 * 1024 * 1024))

    kernel = functools.partial(
        _capsule_kernel, num_iterations=num_iterations, use_approx=use_approx)

    out = pl.pallas_call(
        kernel,
        out_shape=jax.ShapeDtypeStruct((B_pad, N * Cout), jnp.float32),
        grid_spec=pltpu.PrefetchScalarGridSpec(
            num_scalar_prefetch=0,
            grid=(B_pad // TB,),               # batch tiles; routing is independent per b
            in_specs=[
                pl.BlockSpec((TB, Cin, R), lambda b: (b, 0, 0)),
                pl.BlockSpec((N, Cin, Cout, R), lambda b: (0, 0, 0, 0)),
            ],
            out_specs=pl.BlockSpec((TB, N * Cout), lambda b: (b, 0)),
        ),
        compiler_params=pltpu.CompilerParams(
            dimension_semantics=("parallel",),
            vmem_limit_bytes=vmem_limit,
        ),
    )(x_t, w_t)

    out = out[:B].reshape(B, N, Cout)          # (B, N, Cout)
    out = jnp.transpose(out, (1, 0, 2))        # (N, B, Cout)
    return out.reshape(N, B, 1, 1, Cout)


def _reference_routing(x, route_weights, num_iterations=3):
    """Pure-JAX reference mirroring the PyTorch forward (f32-exact einsum)."""
    priors = jnp.einsum("brc,nrco->nbro", x, route_weights,
                        precision=jax.lax.Precision.HIGHEST)[:, :, :, None, :]
    logits = jnp.zeros_like(priors)
    outputs = None
    for i in range(num_iterations):
        probs = jax.nn.softmax(logits, axis=2)
        s = jnp.sum(probs * priors, axis=2, keepdims=True)
        sq = jnp.sum(s * s, axis=-1, keepdims=True)
        outputs = (sq / (1.0 + sq)) * s / jnp.sqrt(sq)
        if i != num_iterations - 1:
            logits = logits + jnp.sum(priors * outputs, axis=-1, keepdims=True)
    return outputs


if __name__ == "__main__":
    # Small shapes consistent with the routing branch of CapsuleLayer.
    B = 2                 # batch
    num_capsules = 4      # N
    num_route_nodes = 16  # R
    in_channels = 8       # C_in
    out_channels = 16     # C_out
    num_iterations = 3

    key = jax.random.PRNGKey(0)
    kx, kw = jax.random.split(key)
    x = jax.random.normal(kx, (B, num_route_nodes, in_channels), dtype=jnp.float32)
    route_weights = jax.random.normal(
        kw, (num_capsules, num_route_nodes, in_channels, out_channels),
        dtype=jnp.float32)

    ref = _reference_routing(x, route_weights, num_iterations)

    # Exact-math kernel path: tight check against the PyTorch-mirroring reference.
    out_exact = jax.block_until_ready(
        capsule_layer_routing(x, route_weights, num_iterations, use_approx=False))
    assert out_exact.shape == (num_capsules, B, 1, 1, out_channels), out_exact.shape
    assert jnp.allclose(out_exact, ref, atol=1e-4, rtol=1e-4), "exact-path mismatch"

    # Production path (EUP approximate reciprocal/rsqrt): looser tolerance to
    # accommodate the hardware approximate ops.
    out_fast = jax.block_until_ready(
        capsule_layer_routing(x, route_weights, num_iterations, use_approx=True))
    assert out_fast.shape == (num_capsules, B, 1, 1, out_channels), out_fast.shape
    assert jnp.allclose(out_fast, ref, atol=5e-2, rtol=5e-2), "approx-path mismatch"

    print("KERNEL_OK")
</pallas_src>

<mosaic_0001>
module attributes {stable_mosaic.version = 11 : i64} {
  func.func @_capsule_kernel(%arg0: i32, %arg1: memref<2x8x16xf32, #tpu.memory_space<vmem>>, %arg2: memref<4x8x16x16xf32, #tpu.memory_space<vmem>>, %arg3: memref<2x64xf32, #tpu.memory_space<vmem>>) attributes {dimension_semantics = [#tpu.dimension_semantics<parallel>], iteration_bounds = array<i64: 1>, scalar_prefetch = 0 : i64, scratch_operands = 0 : i64, tpu.core_type = #tpu.core_type<tc>, window_params = [{transform_indices = @transform_0, window_bounds = array<i64: 2, 8, 16>}, {pipeline_mode = #tpu.pipeline_mode<synchronous>, transform_indices = @transform_1, window_bounds = array<i64: 4, 8, 16, 16>}, {transform_indices = @transform_2, window_bounds = array<i64: 2, 64>}]} {
    %c0 = arith.constant 0 : index
    %c0_0 = arith.constant 0 : index
    %c0_1 = arith.constant 0 : index
    %0 = vector.load %arg1[%c0, %c0_0, %c0_1] : memref<2x8x16xf32, #tpu.memory_space<vmem>>, vector<2x8x16xf32>
    %c0_2 = arith.constant 0 : index
    %c0_3 = arith.constant 0 : index
    %c0_4 = arith.constant 0 : index
    %c0_5 = arith.constant 0 : index
    %1 = vector.load %arg2[%c0_2, %c0_3, %c0_4, %c0_5] : memref<4x8x16x16xf32, #tpu.memory_space<vmem>>, vector<1x8x16x16xf32>
    %2 = vector.shape_cast %1 : vector<1x8x16x16xf32> to vector<8x16x16xf32>
    %3 = vector.extract_strided_slice %0 {offsets = [0, 0, 0], sizes = [2, 1, 16], strides = [1, 1, 1]} : vector<2x8x16xf32> to vector<2x1x16xf32>
    %4 = vector.shape_cast %3 : vector<2x1x16xf32> to vector<2x16xf32>
    %5 = vector.shape_cast %4 : vector<2x16xf32> to vector<2x1x16xf32>
    %6 = vector.extract_strided_slice %2 {offsets = [0, 0, 0], sizes = [1, 16, 16], strides = [1, 1, 1]} : vector<8x16x16xf32> to vector<1x16x16xf32>
    %7 = vector.shape_cast %6 : vector<1x16x16xf32> to vector<16x16xf32>
    %8 = vector.shape_cast %7 : vector<16x16xf32> to vector<1x16x16xf32>
    %9 = vector.broadcast %5 : vector<2x1x16xf32> to vector<2x16x16xf32>
    %10 = vector.broadcast %8 : vector<1x16x16xf32> to vector<2x16x16xf32>
    %11 = arith.mulf %9, %10 : vector<2x16x16xf32>
    %12 = vector.extract_strided_slice %0 {offsets = [0, 1, 0], sizes = [2, 1, 16], strides = [1, 1, 1]} : vector<2x8x16xf32> to vector<2x1x16xf32>
    %13 = vector.shape_cast %12 : vector<2x1x16xf32> to vector<2x16xf32>
    %14 = vector.shape_cast %13 : vector<2x16xf32> to vector<2x1x16xf32>
    %15 = vector.extract_strided_slice %2 {offsets = [1, 0, 0], sizes = [1, 16, 16], strides = [1, 1, 1]} : vector<8x16x16xf32> to vector<1x16x16xf32>
    %16 = vector.shape_cast %15 : vector<1x16x16xf32> to vector<16x16xf32>
    %17 = vector.shape_cast %16 : vector<16x16xf32> to vector<1x16x16xf32>
    %18 = vector.broadcast %14 : vector<2x1x16xf32> to vector<2x16x16xf32>
    %19 = vector.broadcast %17 : vector<1x16x16xf32> to vector<2x16x16xf32>
    %20 = arith.mulf %18, %19 : vector<2x16x16xf32>
    %21 = arith.addf %11, %20 : vector<2x16x16xf32>
    %22 = vector.extract_strided_slice %0 {offsets = [0, 2, 0], sizes = [2, 1, 16], strides = [1, 1, 1]} : vector<2x8x16xf32> to vector<2x1x16xf32>
    %23 = vector.shape_cast %22 : vector<2x1x16xf32> to vector<2x16xf32>
    %24 = vector.shape_cast %23 : vector<2x16xf32> to vector<2x1x16xf32>
    %25 = vector.extract_strided_slice %2 {offsets = [2, 0, 0], sizes = [1, 16, 16], strides = [1, 1, 1]} : vector<8x16x16xf32> to vector<1x16x16xf32>
    %26 = vector.shape_cast %25 : vector<1x16x16xf32> to vector<16x16xf32>
    %27 = vector.shape_cast %26 : vector<16x16xf32> to vector<1x16x16xf32>
    %28 = vector.broadcast %24 : vector<2x1x16xf32> to vector<2x16x16xf32>
    %29 = vector.broadcast %27 : vector<1x16x16xf32> to vector<2x16x16xf32>
    %30 = arith.mulf %28, %29 : vector<2x16x16xf32>
    %31 = arith.addf %21, %30 : vector<2x16x16xf32>
    %32 = vector.extract_strided_slice %0 {offsets = [0, 3, 0], sizes = [2, 1, 16], strides = [1, 1, 1]} : vector<2x8x16xf32> to vector<2x1x16xf32>
    %33 = vector.shape_cast %32 : vector<2x1x16xf32> to vector<2x16xf32>
    %34 = vector.shape_cast %33 : vector<2x16xf32> to vector<2x1x16xf32>
    %35 = vector.extract_strided_slice %2 {offsets = [3, 0, 0], sizes = [1, 16, 16], strides = [1, 1, 1]} : vector<8x16x16xf32> to vector<1x16x16xf32>
    %36 = vector.shape_cast %35 : vector<1x16x16xf32> to vector<16x16xf32>
    %37 = vector.shape_cast %36 : vector<16x16xf32> to vector<1x16x16xf32>
    %38 = vector.broadcast %34 : vector<2x1x16xf32> to vector<2x16x16xf32>
    %39 = vector.broadcast %37 : vector<1x16x16xf32> to vector<2x16x16xf32>
    %40 = arith.mulf %38, %39 : vector<2x16x16xf32>
    %41 = arith.addf %31, %40 : vector<2x16x16xf32>
    %42 = vector.extract_strided_slice %0 {offsets = [0, 4, 0], sizes = [2, 1, 16], strides = [1, 1, 1]} : vector<2x8x16xf32> to vector<2x1x16xf32>
    %43 = vector.shape_cast %42 : vector<2x1x16xf32> to vector<2x16xf32>
    %44 = vector.shape_cast %43 : vector<2x16xf32> to vector<2x1x16xf32>
    %45 = vector.extract_strided_slice %2 {offsets = [4, 0, 0], sizes = [1, 16, 16], strides = [1, 1, 1]} : vector<8x16x16xf32> to vector<1x16x16xf32>
    %46 = vector.shape_cast %45 : vector<1x16x16xf32> to vector<16x16xf32>
    %47 = vector.shape_cast %46 : vector<16x16xf32> to vector<1x16x16xf32>
    %48 = vector.broadcast %44 : vector<2x1x16xf32> to vector<2x16x16xf32>
    %49 = vector.broadcast %47 : vector<1x16x16xf32> to vector<2x16x16xf32>
    %50 = arith.mulf %48, %49 : vector<2x16x16xf32>
    %51 = arith.addf %41, %50 : vector<2x16x16xf32>
    %52 = vector.extract_strided_slice %0 {offsets = [0, 5, 0], sizes = [2, 1, 16], strides = [1, 1, 1]} : vector<2x8x16xf32> to vector<2x1x16xf32>
    %53 = vector.shape_cast %52 : vector<2x1x16xf32> to vector<2x16xf32>
    %54 = vector.shape_cast %53 : vector<2x16xf32> to vector<2x1x16xf32>
    %55 = vector.extract_strided_slice %2 {offsets = [5, 0, 0], sizes = [1, 16, 16], strides = [1, 1, 1]} : vector<8x16x16xf32> to vector<1x16x16xf32>
    %56 = vector.shape_cast %55 : vector<1x16x16xf32> to vector<16x16xf32>
    %57 = vector.shape_cast %56 : vector<16x16xf32> to vector<1x16x16xf32>
    %58 = vector.broadcast %54 : vector<2x1x16xf32> to vector<2x16x16xf32>
    %59 = vector.broadcast %57 : vector<1x16x16xf32> to vector<2x16x16xf32>
    %60 = arith.mulf %58, %59 : vector<2x16x16xf32>
    %61 = arith.addf %51, %60 : vector<2x16x16xf32>
    %62 = vector.extract_strided_slice %0 {offsets = [0, 6, 0], sizes = [2, 1, 16], strides = [1, 1, 1]} : vector<2x8x16xf32> to vector<2x1x16xf32>
    %63 = vector.shape_cast %62 : vector<2x1x16xf32> to vector<2x16xf32>
    %64 = vector.shape_cast %63 : vector<2x16xf32> to vector<2x1x16xf32>
    %65 = vector.extract_strided_slice %2 {offsets = [6, 0, 0], sizes = [1, 16, 16], strides = [1, 1, 1]} : vector<8x16x16xf32> to vector<1x16x16xf32>
    %66 = vector.shape_cast %65 : vector<1x16x16xf32> to vector<16x16xf32>
    %67 = vector.shape_cast %66 : vector<16x16xf32> to vector<1x16x16xf32>
    %68 = vector.broadcast %64 : vector<2x1x16xf32> to vector<2x16x16xf32>
    %69 = vector.broadcast %67 : vector<1x16x16xf32> to vector<2x16x16xf32>
    %70 = arith.mulf %68, %69 : vector<2x16x16xf32>
    %71 = arith.addf %61, %70 : vector<2x16x16xf32>
    %72 = vector.extract_strided_slice %0 {offsets = [0, 7, 0], sizes = [2, 1, 16], strides = [1, 1, 1]} : vector<2x8x16xf32> to vector<2x1x16xf32>
    %73 = vector.shape_cast %72 : vector<2x1x16xf32> to vector<2x16xf32>
    %74 = vector.shape_cast %73 : vector<2x16xf32> to vector<2x1x16xf32>
    %75 = vector.extract_strided_slice %2 {offsets = [7, 0, 0], sizes = [1, 16, 16], strides = [1, 1, 1]} : vector<8x16x16xf32> to vector<1x16x16xf32>
    %76 = vector.shape_cast %75 : vector<1x16x16xf32> to vector<16x16xf32>
    %77 = vector.shape_cast %76 : vector<16x16xf32> to vector<1x16x16xf32>
    %78 = vector.broadcast %74 : vector<2x1x16xf32> to vector<2x16x16xf32>
    %79 = vector.broadcast %77 : vector<1x16x16xf32> to vector<2x16x16xf32>
    %80 = arith.mulf %78, %79 : vector<2x16x16xf32>
    %81 = arith.addf %71, %80 : vector<2x16x16xf32>
    %cst = arith.constant dense<0.000000e+00> : vector<2x16xf32>
    %82 = vector.multi_reduction <add>, %81, %cst [2] : vector<2x16x16xf32> to vector<2x16xf32>
    %cst_6 = arith.constant 6.250000e-02 : f32
    %83 = vector.broadcast %cst_6 : f32 to vector<2x16xf32>
    %84 = arith.mulf %82, %83 : vector<2x16xf32>
    %85 = arith.mulf %84, %84 : vector<2x16xf32>
    %cst_7 = arith.constant dense<0.000000e+00> : vector<2xf32>
    %86 = vector.multi_reduction <add>, %85, %cst_7 [1] : vector<2x16xf32> to vector<2xf32>
    %87 = vector.shape_cast %86 : vector<2xf32> to vector<2x1xf32>
    %cst_8 = arith.constant 1.000000e+00 : f32
    %88 = vector.broadcast %cst_8 : f32 to vector<2x1xf32>
    %89 = arith.addf %88, %87 : vector<2x1xf32>
    %90 = arith.divf %87, %89 : vector<2x1xf32>
    %91 = vector.broadcast %90 : vector<2x1xf32> to vector<2x16xf32>
    %92 = arith.mulf %91, %84 : vector<2x16xf32>
    %93 = math.sqrt %87 : vector<2x1xf32>
    %94 = vector.broadcast %93 : vector<2x1xf32> to vector<2x16xf32>
    %95 = arith.divf %92, %94 : vector<2x16xf32>
    %96 = vector.shape_cast %95 : vector<2x16xf32> to vector<2x16x1xf32>
    %97 = vector.broadcast %96 : vector<2x16x1xf32> to vector<2x16x16xf32>
    %98 = arith.mulf %81, %97 : vector<2x16x16xf32>
    %cst_9 = arith.constant dense<0.000000e+00> : vector<2x16xf32>
    %99 = vector.multi_reduction <add>, %98, %cst_9 [1] : vector<2x16x16xf32> to vector<2x16xf32>
    %cst_10 = arith.constant dense<0xFF800000> : vector<2xf32>
    %100 = vector.multi_reduction <maximumf>, %99, %cst_10 [1] : vector<2x16xf32> to vector<2xf32>
    %101 = vector.shape_cast %100 : vector<2xf32> to vector<2x1xf32>
    %102 = vector.broadcast %101 : vector<2x1xf32> to vector<2x16xf32>
    %103 = arith.subf %99, %102 : vector<2x16xf32>
    %104 = math.exp %103 : vector<2x16xf32>
    %cst_11 = arith.constant dense<0.000000e+00> : vector<2xf32>
    %105 = vector.multi_reduction <add>, %104, %cst_11 [1] : vector<2x16xf32> to vector<2xf32>
    %106 = vector.shape_cast %105 : vector<2xf32> to vector<2x1xf32>
    %cst_12 = arith.constant 1.000000e+00 : f32
    %107 = vector.broadcast %cst_12 : f32 to vector<2x1xf32>
    %108 = arith.divf %107, %106 : vector<2x1xf32>
    %109 = vector.broadcast %108 : vector<2x1xf32> to vector<2x16xf32>
    %110 = arith.mulf %104, %109 : vector<2x16xf32>
    %111 = vector.shape_cast %110 : vector<2x16xf32> to vector<2x1x16xf32>
    %112 = vector.broadcast %111 : vector<2x1x16xf32> to vector<2x16x16xf32>
    %113 = arith.mulf %112, %81 : vector<2x16x16xf32>
    %cst_13 = arith.constant dense<0.000000e+00> : vector<2x16xf32>
    %114 = vector.multi_reduction <add>, %113, %cst_13 [2] : vector<2x16x16xf32> to vector<2x16xf32>
    %115 = arith.mulf %114, %114 : vector<2x16xf32>
    %cst_14 = arith.constant dense<0.000000e+00> : vector<2xf32>
    %116 = vector.multi_reduction <add>, %115, %cst_14 [1] : vector<2x16xf32> to vector<2xf32>
    %117 = vector.shape_cast %116 : vector<2xf32> to vector<2x1xf32>
    %cst_15 = arith.constant 1.000000e+00 : f32
    %118 = vector.broadcast %cst_15 : f32 to vector<2x1xf32>
    %119 = arith.addf %118, %117 : vector<2x1xf32>
    %120 = arith.divf %117, %119 : vector<2x1xf32>
    %121 = vector.broadcast %120 : vector<2x1xf32> to vector<2x16xf32>
    %122 = arith.mulf %121, %114 : vector<2x16xf32>
    %123 = math.sqrt %117 : vector<2x1xf32>
    %124 = vector.broadcast %123 : vector<2x1xf32> to vector<2x16xf32>
    %125 = arith.divf %122, %124 : vector<2x16xf32>
    %126 = vector.shape_cast %125 : vector<2x16xf32> to vector<2x16x1xf32>
    %127 = vector.broadcast %126 : vector<2x16x1xf32> to vector<2x16x16xf32>
    %128 = arith.mulf %81, %127 : vector<2x16x16xf32>
    %cst_16 = arith.constant dense<0.000000e+00> : vector<2x16xf32>
    %129 = vector.multi_reduction <add>, %128, %cst_16 [1] : vector<2x16x16xf32> to vector<2x16xf32>
    %130 = arith.addf %99, %129 : vector<2x16xf32>
    %cst_17 = arith.constant dense<0xFF800000> : vector<2xf32>
    %131 = vector.multi_reduction <maximumf>, %130, %cst_17 [1] : vector<2x16xf32> to vector<2xf32>
    %132 = vector.shape_cast %131 : vector<2xf32> to vector<2x1xf32>
    %133 = vector.broadcast %132 : vector<2x1xf32> to vector<2x16xf32>
    %134 = arith.subf %130, %133 : vector<2x16xf32>
    %135 = math.exp %134 : vector<2x16xf32>
    %cst_18 = arith.constant dense<0.000000e+00> : vector<2xf32>
    %136 = vector.multi_reduction <add>, %135, %cst_18 [1] : vector<2x16xf32> to vector<2xf32>
    %137 = vector.shape_cast %136 : vector<2xf32> to vector<2x1xf32>
    %cst_19 = arith.constant 1.000000e+00 : f32
    %138 = vector.broadcast %cst_19 : f32 to vector<2x1xf32>
    %139 = arith.divf %138, %137 : vector<2x1xf32>
    %140 = vector.broadcast %139 : vector<2x1xf32> to vector<2x16xf32>
    %141 = arith.mulf %135, %140 : vector<2x16xf32>
    %142 = vector.shape_cast %141 : vector<2x16xf32> to vector<2x1x16xf32>
    %143 = vector.broadcast %142 : vector<2x1x16xf32> to vector<2x16x16xf32>
    %144 = arith.mulf %143, %81 : vector<2x16x16xf32>
    %cst_20 = arith.constant dense<0.000000e+00> : vector<2x16xf32>
    %145 = vector.multi_reduction <add>, %144, %cst_20 [2] : vector<2x16x16xf32> to vector<2x16xf32>
    %146 = arith.mulf %145, %145 : vector<2x16xf32>
    %cst_21 = arith.constant dense<0.000000e+00> : vector<2xf32>
    %147 = vector.multi_reduction <add>, %146, %cst_21 [1] : vector<2x16xf32> to vector<2xf32>
    %148 = vector.shape_cast %147 : vector<2xf32> to vector<2x1xf32>
    %cst_22 = arith.constant 1.000000e+00 : f32
    %149 = vector.broadcast %cst_22 : f32 to vector<2x1xf32>
    %150 = arith.addf %149, %148 : vector<2x1xf32>
    %151 = arith.divf %148, %150 : vector<2x1xf32>
    %152 = vector.broadcast %151 : vector<2x1xf32> to vector<2x16xf32>
    %153 = arith.mulf %152, %145 : vector<2x16xf32>
    %154 = math.sqrt %148 : vector<2x1xf32>
    %155 = vector.broadcast %154 : vector<2x1xf32> to vector<2x16xf32>
    %156 = arith.divf %153, %155 : vector<2x16xf32>
    %c1 = arith.constant 1 : index
    %c0_23 = arith.constant 0 : index
    %c0_24 = arith.constant 0 : index
    %c0_25 = arith.constant 0 : index
    %157 = vector.load %arg2[%c1, %c0_23, %c0_24, %c0_25] : memref<4x8x16x16xf32, #tpu.memory_space<vmem>>, vector<1x8x16x16xf32>
    %158 = vector.shape_cast %157 : vector<1x8x16x16xf32> to vector<8x16x16xf32>
    %159 = vector.extract_strided_slice %0 {offsets = [0, 0, 0], sizes = [2, 1, 16], strides = [1, 1, 1]} : vector<2x8x16xf32> to vector<2x1x16xf32>
    %160 = vector.shape_cast %159 : vector<2x1x16xf32> to vector<2x16xf32>
    %161 = vector.shape_cast %160 : vector<2x16xf32> to vector<2x1x16xf32>
    %162 = vector.extract_strided_slice %158 {offsets = [0, 0, 0], sizes = [1, 16, 16], strides = [1, 1, 1]} : vector<8x16x16xf32> to vector<1x16x16xf32>
    %163 = vector.shape_cast %162 : vector<1x16x16xf32> to vector<16x16xf32>
    %164 = vector.shape_cast %163 : vector<16x16xf32> to vector<1x16x16xf32>
    %165 = vector.broadcast %161 : vector<2x1x16xf32> to vector<2x16x16xf32>
    %166 = vector.broadcast %164 : vector<1x16x16xf32> to vector<2x16x16xf32>
    %167 = arith.mulf %165, %166 : vector<2x16x16xf32>
    %168 = vector.extract_strided_slice %0 {offsets = [0, 1, 0], sizes = [2, 1, 16], strides = [1, 1, 1]} : vector<2x8x16xf32> to vector<2x1x16xf32>
    %169 = vector.shape_cast %168 : vector<2x1x16xf32> to vector<2x16xf32>
    %170 = vector.shape_cast %169 : vector<2x16xf32> to vector<2x1x16xf32>
    %171 = vector.extract_strided_slice %158 {offsets = [1, 0, 0], sizes = [1, 16, 16], strides = [1, 1, 1]} : vector<8x16x16xf32> to vector<1x16x16xf32>
    %172 = vector.shape_cast %171 : vector<1x16x16xf32> to vector<16x16xf32>
    %173 = vector.shape_cast %172 : vector<16x16xf32> to vector<1x16x16xf32>
    %174 = vector.broadcast %170 : vector<2x1x16xf32> to vector<2x16x16xf32>
    %175 = vector.broadcast %173 : vector<1x16x16xf32> to vector<2x16x16xf32>
    %176 = arith.mulf %174, %175 : vector<2x16x16xf32>
    %177 = arith.addf %167, %176 : vector<2x16x16xf32>
    %178 = vector.extract_strided_slice %0 {offsets = [0, 2, 0], sizes = [2, 1, 16], strides = [1, 1, 1]} : vector<2x8x16xf32> to vector<2x1x16xf32>
    %179 = vector.shape_cast %178 : vector<2x1x16xf32> to vector<2x16xf32>
    %180 = vector.shape_cast %179 : vector<2x16xf32> to vector<2x1x16xf32>
    %181 = vector.extract_strided_slice %158 {offsets = [2, 0, 0], sizes = [1, 16, 16], strides = [1, 1, 1]} : vector<8x16x16xf32> to vector<1x16x16xf32>
    %182 = vector.shape_cast %181 : vector<1x16x16xf32> to vector<16x16xf32>
    %183 = vector.shape_cast %182 : vector<16x16xf32> to vector<1x16x16xf32>
    %184 = vector.broadcast %180 : vector<2x1x16xf32> to vector<2x16x16xf32>
    %185 = vector.broadcast %183 : vector<1x16x16xf32> to vector<2x16x16xf32>
    %186 = arith.mulf %184, %185 : vector<2x16x16xf32>
    %187 = arith.addf %177, %186 : vector<2x16x16xf32>
    %188 = vector.extract_strided_slice %0 {offsets = [0, 3, 0], sizes = [2, 1, 16], strides = [1, 1, 1]} : vector<2x8x16xf32> to vector<2x1x16xf32>
    %189 = vector.shape_cast %188 : vector<2x1x16xf32> to vector<2x16xf32>
    %190 = vector.shape_cast %189 : vector<2x16xf32> to vector<2x1x16xf32>
    %191 = vector.extract_strided_slice %158 {offsets = [3, 0, 0], sizes = [1, 16, 16], strides = [1, 1, 1]} : vector<8x16x16xf32> to vector<1x16x16xf32>
    %192 = vector.shape_cast %191 : vector<1x16x16xf32> to vector<16x16xf32>
    %193 = vector.shape_cast %192 : vector<16x16xf32> to vector<1x16x16xf32>
    %194 = vector.broadcast %190 : vector<2x1x16xf32> to vector<2x16x16xf32>
    %195 = vector.broadcast %193 : vector<1x16x16xf32> to vector<2x16x16xf32>
    %196 = arith.mulf %194, %195 : vector<2x16x16xf32>
    %197 = arith.addf %187, %196 : vector<2x16x16xf32>
    %198 = vector.extract_strided_slice %0 {offsets = [0, 4, 0], sizes = [2, 1, 16], strides = [1, 1, 1]} : vector<2x8x16xf32> to vector<2x1x16xf32>
    %199 = vector.shape_cast %198 : vector<2x1x16xf32> to vector<2x16xf32>
    %200 = vector.shape_cast %199 : vector<2x16xf32> to vector<2x1x16xf32>
    %201 = vector.extract_strided_slice %158 {offsets = [4, 0, 0], sizes = [1, 16, 16], strides = [1, 1, 1]} : vector<8x16x16xf32> to vector<1x16x16xf32>
    %202 = vector.shape_cast %201 : vector<1x16x16xf32> to vector<16x16xf32>
    %203 = vector.shape_cast %202 : vector<16x16xf32> to vector<1x16x16xf32>
    %204 = vector.broadcast %200 : vector<2x1x16xf32> to vector<2x16x16xf32>
    %205 = vector.broadcast %203 : vector<1x16x16xf32> to vector<2x16x16xf32>
    %206 = arith.mulf %204, %205 : vector<2x16x16xf32>
    %207 = arith.addf %197, %206 : vector<2x16x16xf32>
    %208 = vector.extract_strided_slice %0 {offsets = [0, 5, 0], sizes = [2, 1, 16], strides = [1, 1, 1]} : vector<2x8x16xf32> to vector<2x1x16xf32>
    %209 = vector.shape_cast %208 : vector<2x1x16xf32> to vector<2x16xf32>
    %210 = vector.shape_cast %209 : vector<2x16xf32> to vector<2x1x16xf32>
    %211 = vector.extract_strided_slice %158 {offsets = [5, 0, 0], sizes = [1, 16, 16], strides = [1, 1, 1]} : vector<8x16x16xf32> to vector<1x16x16xf32>
    %212 = vector.shape_cast %211 : vector<1x16x16xf32> to vector<16x16xf32>
    %213 = vector.shape_cast %212 : vector<16x16xf32> to vector<1x16x16xf32>
    %214 = vector.broadcast %210 : vector<2x1x16xf32> to vector<2x16x16xf32>
    %215 = vector.broadcast %213 : vector<1x16x16xf32> to vector<2x16x16xf32>
    %216 = arith.mulf %214, %215 : vector<2x16x16xf32>
    %217 = arith.addf %207, %216 : vector<2x16x16xf32>
    %218 = vector.extract_strided_slice %0 {offsets = [0, 6, 0], sizes = [2, 1, 16], strides = [1, 1, 1]} : vector<2x8x16xf32> to vector<2x1x16xf32>
    %219 = vector.shape_cast %218 : vector<2x1x16xf32> to vector<2x16xf32>
    %220 = vector.shape_cast %219 : vector<2x16xf32> to vector<2x1x16xf32>
    %221 = vector.extract_strided_slice %158 {offsets = [6, 0, 0], sizes = [1, 16, 16], strides = [1, 1, 1]} : vector<8x16x16xf32> to vector<1x16x16xf32>
    %222 = vector.shape_cast %221 : vector<1x16x16xf32> to vector<16x16xf32>
    %223 = vector.shape_cast %222 : vector<16x16xf32> to vector<1x16x16xf32>
    %224 = vector.broadcast %220 : vector<2x1x16xf32> to vector<2x16x16xf32>
    %225 = vector.broadcast %223 : vector<1x16x16xf32> to vector<2x16x16xf32>
    %226 = arith.mulf %224, %225 : vector<2x16x16xf32>
    %227 = arith.addf %217, %226 : vector<2x16x16xf32>
    %228 = vector.extract_strided_slice %0 {offsets = [0, 7, 0], sizes = [2, 1, 16], strides = [1, 1, 1]} : vector<2x8x16xf32> to vector<2x1x16xf32>
    %229 = vector.shape_cast %228 : vector<2x1x16xf32> to vector<2x16xf32>
    %230 = vector.shape_cast %229 : vector<2x16xf32> to vector<2x1x16xf32>
    %231 = vector.extract_strided_slice %158 {offsets = [7, 0, 0], sizes = [1, 16, 16], strides = [1, 1, 1]} : vector<8x16x16xf32> to vector<1x16x16xf32>
    %232 = vector.shape_cast %231 : vector<1x16x16xf32> to vector<16x16xf32>
    %233 = vector.shape_cast %232 : vector<16x16xf32> to vector<1x16x16xf32>
    %234 = vector.broadcast %230 : vector<2x1x16xf32> to vector<2x16x16xf32>
    %235 = vector.broadcast %233 : vector<1x16x16xf32> to vector<2x16x16xf32>
    %236 = arith.mulf %234, %235 : vector<2x16x16xf32>
    %237 = arith.addf %227, %236 : vector<2x16x16xf32>
    %cst_26 = arith.constant dense<0.000000e+00> : vector<2x16xf32>
    %238 = vector.multi_reduction <add>, %237, %cst_26 [2] : vector<2x16x16xf32> to vector<2x16xf32>
    %cst_27 = arith.constant 6.250000e-02 : f32
    %239 = vector.broadcast %cst_27 : f32 to vector<2x16xf32>
    %240 = arith.mulf %238, %239 : vector<2x16xf32>
    %241 = arith.mulf %240, %240 : vector<2x16xf32>
    %cst_28 = arith.constant dense<0.000000e+00> : vector<2xf32>
    %242 = vector.multi_reduction <add>, %241, %cst_28 [1] : vector<2x16xf32> to vector<2xf32>
    %243 = vector.shape_cast %242 : vector<2xf32> to vector<2x1xf32>
    %cst_29 = arith.constant 1.000000e+00 : f32
    %244 = vector.broadcast %cst_29 : f32 to vector<2x1xf32>
    %245 = arith.addf %244, %243 : vector<2x1xf32>
    %246 = arith.divf %243, %245 : vector<2x1xf32>
    %247 = vector.broadcast %246 : vector<2x1xf32> to vector<2x16xf32>
    %248 = arith.mulf %247, %240 : vector<2x16xf32>
    %249 = math.sqrt %243 : vector<2x1xf32>
    %250 = vector.broadcast %249 : vector<2x1xf32> to vector<2x16xf32>
    %251 = arith.divf %248, %250 : vector<2x16xf32>
    %252 = vector.shape_cast %251 : vector<2x16xf32> to vector<2x16x1xf32>
    %253 = vector.broadcast %252 : vector<2x16x1xf32> to vector<2x16x16xf32>
    %254 = arith.mulf %237, %253 : vector<2x16x16xf32>
    %cst_30 = arith.constant dense<0.000000e+00> : vector<2x16xf32>
    %255 = vector.multi_reduction <add>, %254, %cst_30 [1] : vector<2x16x16xf32> to vector<2x16xf32>
    %cst_31 = arith.constant dense<0xFF800000> : vector<2xf32>
    %256 = vector.multi_reduction <maximumf>, %255, %cst_31 [1] : vector<2x16xf32> to vector<2xf32>
    %257 = vector.shape_cast %256 : vector<2xf32> to vector<2x1xf32>
    %258 = vector.broadcast %257 : vector<2x1xf32> to vector<2x16xf32>
    %259 = arith.subf %255, %258 : vector<2x16xf32>
    %260 = math.exp %259 : vector<2x16xf32>
    %cst_32 = arith.constant dense<0.000000e+00> : vector<2xf32>
    %261 = vector.multi_reduction <add>, %260, %cst_32 [1] : vector<2x16xf32> to vector<2xf32>
    %262 = vector.shape_cast %261 : vector<2xf32> to vector<2x1xf32>
    %cst_33 = arith.constant 1.000000e+00 : f32
    %263 = vector.broadcast %cst_33 : f32 to vector<2x1xf32>
    %264 = arith.divf %263, %262 : vector<2x1xf32>
    %265 = vector.broadcast %264 : vector<2x1xf32> to vector<2x16xf32>
    %266 = arith.mulf %260, %265 : vector<2x16xf32>
    %267 = vector.shape_cast %266 : vector<2x16xf32> to vector<2x1x16xf32>
    %268 = vector.broadcast %267 : vector<2x1x16xf32> to vector<2x16x16xf32>
    %269 = arith.mulf %268, %237 : vector<2x16x16xf32>
    %cst_34 = arith.constant dense<0.000000e+00> : vector<2x16xf32>
    %270 = vector.multi_reduction <add>, %269, %cst_34 [2] : vector<2x16x16xf32> to vector<2x16xf32>
    %271 = arith.mulf %270, %270 : vector<2x16xf32>
    %cst_35 = arith.constant dense<0.000000e+00> : vector<2xf32>
    %272 = vector.multi_reduction <add>, %271, %cst_35 [1] : vector<2x16xf32> to vector<2xf32>
    %273 = vector.shape_cast %272 : vector<2xf32> to vector<2x1xf32>
    %cst_36 = arith.constant 1.000000e+00 : f32
    %274 = vector.broadcast %cst_36 : f32 to vector<2x1xf32>
    %275 = arith.addf %274, %273 : vector<2x1xf32>
    %276 = arith.divf %273, %275 : vector<2x1xf32>
    %277 = vector.broadcast %276 : vector<2x1xf32> to vector<2x16xf32>
    %278 = arith.mulf %277, %270 : vector<2x16xf32>
    %279 = math.sqrt %273 : vector<2x1xf32>
    %280 = vector.broadcast %279 : vector<2x1xf32> to vector<2x16xf32>
    %281 = arith.divf %278, %280 : vector<2x16xf32>
    %282 = vector.shape_cast %281 : vector<2x16xf32> to vector<2x16x1xf32>
    %283 = vector.broadcast %282 : vector<2x16x1xf32> to vector<2x16x16xf32>
    %284 = arith.mulf %237, %283 : vector<2x16x16xf32>
    %cst_37 = arith.constant dense<0.000000e+00> : vector<2x16xf32>
    %285 = vector.multi_reduction <add>, %284, %cst_37 [1] : vector<2x16x16xf32> to vector<2x16xf32>
    %286 = arith.addf %255, %285 : vector<2x16xf32>
    %cst_38 = arith.constant dense<0xFF800000> : vector<2xf32>
    %287 = vector.multi_reduction <maximumf>, %286, %cst_38 [1] : vector<2x16xf32> to vector<2xf32>
    %288 = vector.shape_cast %287 : vector<2xf32> to vector<2x1xf32>
    %289 = vector.broadcast %288 : vector<2x1xf32> to vector<2x16xf32>
    %290 = arith.subf %286, %289 : vector<2x16xf32>
    %291 = math.exp %290 : vector<2x16xf32>
    %cst_39 = arith.constant dense<0.000000e+00> : vector<2xf32>
    %292 = vector.multi_reduction <add>, %291, %cst_39 [1] : vector<2x16xf32> to vector<2xf32>
    %293 = vector.shape_cast %292 : vector<2xf32> to vector<2x1xf32>
    %cst_40 = arith.constant 1.000000e+00 : f32
    %294 = vector.broadcast %cst_40 : f32 to vector<2x1xf32>
    %295 = arith.divf %294, %293 : vector<2x1xf32>
    %296 = vector.broadcast %295 : vector<2x1xf32> to vector<2x16xf32>
    %297 = arith.mulf %291, %296 : vector<2x16xf32>
    %298 = vector.shape_cast %297 : vector<2x16xf32> to vector<2x1x16xf32>
    %299 = vector.broadcast %298 : vector<2x1x16xf32> to vector<2x16x16xf32>
    %300 = arith.mulf %299, %237 : vector<2x16x16xf32>
    %cst_41 = arith.constant dense<0.000000e+00> : vector<2x16xf32>
    %301 = vector.multi_reduction <add>, %300, %cst_41 [2] : vector<2x16x16xf32> to vector<2x16xf32>
    %302 = arith.mulf %301, %301 : vector<2x16xf32>
    %cst_42 = arith.constant dense<0.000000e+00> : vector<2xf32>
    %303 = vector.multi_reduction <add>, %302, %cst_42 [1] : vector<2x16xf32> to vector<2xf32>
    %304 = vector.shape_cast %303 : vector<2xf32> to vector<2x1xf32>
    %cst_43 = arith.constant 1.000000e+00 : f32
    %305 = vector.broadcast %cst_43 : f32 to vector<2x1xf32>
    %306 = arith.addf %305, %304 : vector<2x1xf32>
    %307 = arith.divf %304, %306 : vector<2x1xf32>
    %308 = vector.broadcast %307 : vector<2x1xf32> to vector<2x16xf32>
    %309 = arith.mulf %308, %301 : vector<2x16xf32>
    %310 = math.sqrt %304 : vector<2x1xf32>
    %311 = vector.broadcast %310 : vector<2x1xf32> to vector<2x16xf32>
    %312 = arith.divf %309, %311 : vector<2x16xf32>
    %c2 = arith.constant 2 : index
    %c0_44 = arith.constant 0 : index
    %c0_45 = arith.constant 0 : index
    %c0_46 = arith.constant 0 : index
    %313 = vector.load %arg2[%c2, %c0_44, %c0_45, %c0_46] : memref<4x8x16x16xf32, #tpu.memory_space<vmem>>, vector<1x8x16x16xf32>
    %314 = vector.shape_cast %313 : vector<1x8x16x16xf32> to vector<8x16x16xf32>
    %315 = vector.extract_strided_slice %0 {offsets = [0, 0, 0], sizes = [2, 1, 16], strides = [1, 1, 1]} : vector<2x8x16xf32> to vector<2x1x16xf32>
    %316 = vector.shape_cast %315 : vector<2x1x16xf32> to vector<2x16xf32>
    %317 = vector.shape_cast %316 : vector<2x16xf32> to vector<2x1x16xf32>
    %318 = vector.extract_strided_slice %314 {offsets = [0, 0, 0], sizes = [1, 16, 16], strides = [1, 1, 1]} : vector<8x16x16xf32> to vector<1x16x16xf32>
    %319 = vector.shape_cast %318 : vector<1x16x16xf32> to vector<16x16xf32>
    %320 = vector.shape_cast %319 : vector<16x16xf32> to vector<1x16x16xf32>
    %321 = vector.broadcast %317 : vector<2x1x16xf32> to vector<2x16x16xf32>
    %322 = vector.broadcast %320 : vector<1x16x16xf32> to vector<2x16x16xf32>
    %323 = arith.mulf %321, %322 : vector<2x16x16xf32>
    %324 = vector.extract_strided_slice %0 {offsets = [0, 1, 0], sizes = [2, 1, 16], strides = [1, 1, 1]} : vector<2x8x16xf32> to vector<2x1x16xf32>
    %325 = vector.shape_cast %324 : vector<2x1x16xf32> to vector<2x16xf32>
    %326 = vector.shape_cast %325 : vector<2x16xf32> to vector<2x1x16xf32>
    %327 = vector.extract_strided_slice %314 {offsets = [1, 0, 0], sizes = [1, 16, 16], strides = [1, 1, 1]} : vector<8x16x16xf32> to vector<1x16x16xf32>
    %328 = vector.shape_cast %327 : vector<1x16x16xf32> to vector<16x16xf32>
    %329 = vector.shape_cast %328 : vector<16x16xf32> to vector<1x16x16xf32>
    %330 = vector.broadcast %326 : vector<2x1x16xf32> to vector<2x16x16xf32>
    %331 = vector.broadcast %329 : vector<1x16x16xf32> to vector<2x16x16xf32>
    %332 = arith.mulf %330, %331 : vector<2x16x16xf32>
    %333 = arith.addf %323, %332 : vector<2x16x16xf32>
    %334 = vector.extract_strided_slice %0 {offsets = [0, 2, 0], sizes = [2, 1, 16], strides = [1, 1, 1]} : vector<2x8x16xf32> to vector<2x1x16xf32>
    %335 = vector.shape_cast %334 : vector<2x1x16xf32> to vector<2x16xf32>
    %336 = vector.shape_cast %335 : vector<2x16xf32> to vector<2x1x16xf32>
    %337 = vector.extract_strided_slice %314 {offsets = [2, 0, 0], sizes = [1, 16, 16], strides = [1, 1, 1]} : vector<8x16x16xf32> to vector<1x16x16xf32>
    %338 = vector.shape_cast %337 : vector<1x16x16xf32> to vector<16x16xf32>
    %339 = vector.shape_cast %338 : vector<16x16xf32> to vector<1x16x16xf32>
    %340 = vector.broadcast %336 : vector<2x1x16xf32> to vector<2x16x16xf32>
    %341 = vector.broadcast %339 : vector<1x16x16xf32> to vector<2x16x16xf32>
    %342 = arith.mulf %340, %341 : vector<2x16x16xf32>
    %343 = arith.addf %333, %342 : vector<2x16x16xf32>
    %344 = vector.extract_strided_slice %0 {offsets = [0, 3, 0], sizes = [2, 1, 16], strides = [1, 1, 1]} : vector<2x8x16xf32> to vector<2x1x16xf32>
    %345 = vector.shape_cast %344 : vector<2x1x16xf32> to vector<2x16xf32>
    %346 = vector.shape_cast %345 : vector<2x16xf32> to vector<2x1x16xf32>
    %347 = vector.extract_strided_slice %314 {offsets = [3, 0, 0], sizes = [1, 16, 16], strides = [1, 1, 1]} : vector<8x16x16xf32> to vector<1x16x16xf32>
    %348 = vector.shape_cast %347 : vector<1x16x16xf32> to vector<16x16xf32>
    %349 = vector.shape_cast %348 : vector<16x16xf32> to vector<1x16x16xf32>
    %350 = vector.broadcast %346 : vector<2x1x16xf32> to vector<2x16x16xf32>
    %351 = vector.broadcast %349 : vector<1x16x16xf32> to vector<2x16x16xf32>
    %352 = arith.mulf %350, %351 : vector<2x16x16xf32>
    %353 = arith.addf %343, %352 : vector<2x16x16xf32>
    %354 = vector.extract_strided_slice %0 {offsets = [0, 4, 0], sizes = [2, 1, 16], strides = [1, 1, 1]} : vector<2x8x16xf32> to vector<2x1x16xf32>
    %355 = vector.shape_cast %354 : vector<2x1x16xf32> to vector<2x16xf32>
    %356 = vector.shape_cast %355 : vector<2x16xf32> to vector<2x1x16xf32>
    %357 = vector.extract_strided_slice %314 {offsets = [4, 0, 0], sizes = [1, 16, 16], strides = [1, 1, 1]} : vector<8x16x16xf32> to vector<1x16x16xf32>
    %358 = vector.shape_cast %357 : vector<1x16x16xf32> to vector<16x16xf32>
    %359 = vector.shape_cast %358 : vector<16x16xf32> to vector<1x16x16xf32>
    %360 = vector.broadcast %356 : vector<2x1x16xf32> to vector<2x16x16xf32>
    %361 = vector.broadcast %359 : vector<1x16x16xf32> to vector<2x16x16xf32>
    %362 = arith.mulf %360, %361 : vector<2x16x16xf32>
    %363 = arith.addf %353, %362 : vector<2x16x16xf32>
    %364 = vector.extract_strided_slice %0 {offsets = [0, 5, 0], sizes = [2, 1, 16], strides = [1, 1, 1]} : vector<2x8x16xf32> to vector<2x1x16xf32>
    %365 = vector.shape_cast %364 : vector<2x1x16xf32> to vector<2x16xf32>
    %366 = vector.shape_cast %365 : vector<2x16xf32> to vector<2x1x16xf32>
    %367 = vector.extract_strided_slice %314 {offsets = [5, 0, 0], sizes = [1, 16, 16], strides = [1, 1, 1]} : vector<8x16x16xf32> to vector<1x16x16xf32>
    %368 = vector.shape_cast %367 : vector<1x16x16xf32> to vector<16x16xf32>
    %369 = vector.shape_cast %368 : vector<16x16xf32> to vector<1x16x16xf32>
    %370 = vector.broadcast %366 : vector<2x1x16xf32> to vector<2x16x16xf32>
    %371 = vector.broadcast %369 : vector<1x16x16xf32> to vector<2x16x16xf32>
    %372 = arith.mulf %370, %371 : vector<2x16x16xf32>
    %373 = arith.addf %363, %372 : vector<2x16x16xf32>
    %374 = vector.extract_strided_slice %0 {offsets = [0, 6, 0], sizes = [2, 1, 16], strides = [1, 1, 1]} : vector<2x8x16xf32> to vector<2x1x16xf32>
    %375 = vector.shape_cast %374 : vector<2x1x16xf32> to vector<2x16xf32>
    %376 = vector.shape_cast %375 : vector<2x16xf32> to vector<2x1x16xf32>
    %377 = vector.extract_strided_slice %314 {offsets = [6, 0, 0], sizes = [1, 16, 16], strides = [1, 1, 1]} : vector<8x16x16xf32> to vector<1x16x16xf32>
    %378 = vector.shape_cast %377 : vector<1x16x16xf32> to vector<16x16xf32>
    %379 = vector.shape_cast %378 : vector<16x16xf32> to vector<1x16x16xf32>
    %380 = vector.broadcast %376 : vector<2x1x16xf32> to vector<2x16x16xf32>
    %381 = vector.broadcast %379 : vector<1x16x16xf32> to vector<2x16x16xf32>
    %382 = arith.mulf %380, %381 : vector<2x16x16xf32>
    %383 = arith.addf %373, %382 : vector<2x16x16xf32>
    %384 = vector.extract_strided_slice %0 {offsets = [0, 7, 0], sizes = [2, 1, 16], strides = [1, 1, 1]} : vector<2x8x16xf32> to vector<2x1x16xf32>
    %385 = vector.shape_cast %384 : vector<2x1x16xf32> to vector<2x16xf32>
    %386 = vector.shape_cast %385 : vector<2x16xf32> to vector<2x1x16xf32>
    %387 = vector.extract_strided_slice %314 {offsets = [7, 0, 0], sizes = [1, 16, 16], strides = [1, 1, 1]} : vector<8x16x16xf32> to vector<1x16x16xf32>
    %388 = vector.shape_cast %387 : vector<1x16x16xf32> to vector<16x16xf32>
    %389 = vector.shape_cast %388 : vector<16x16xf32> to vector<1x16x16xf32>
    %390 = vector.broadcast %386 : vector<2x1x16xf32> to vector<2x16x16xf32>
    %391 = vector.broadcast %389 : vector<1x16x16xf32> to vector<2x16x16xf32>
    %392 = arith.mulf %390, %391 : vector<2x16x16xf32>
    %393 = arith.addf %383, %392 : vector<2x16x16xf32>
    %cst_47 = arith.constant dense<0.000000e+00> : vector<2x16xf32>
    %394 = vector.multi_reduction <add>, %393, %cst_47 [2] : vector<2x16x16xf32> to vector<2x16xf32>
    %cst_48 = arith.constant 6.250000e-02 : f32
    %395 = vector.broadcast %cst_48 : f32 to vector<2x16xf32>
    %396 = arith.mulf %394, %395 : vector<2x16xf32>
    %397 = arith.mulf %396, %396 : vector<2x16xf32>
    %cst_49 = arith.constant dense<0.000000e+00> : vector<2xf32>
    %398 = vector.multi_reduction <add>, %397, %cst_49 [1] : vector<2x16xf32> to vector<2xf32>
    %399 = vector.shape_cast %398 : vector<2xf32> to vector<2x1xf32>
    %cst_50 = arith.constant 1.000000e+00 : f32
    %400 = vector.broadcast %cst_50 : f32 to vector<2x1xf32>
    %401 = arith.addf %400, %399 : vector<2x1xf32>
    %402 = arith.divf %399, %401 : vector<2x1xf32>
    %403 = vector.broadcast %402 : vector<2x1xf32> to vector<2x16xf32>
    %404 = arith.mulf %403, %396 : vector<2x16xf32>
    %405 = math.sqrt %399 : vector<2x1xf32>
    %406 = vector.broadcast %405 : vector<2x1xf32> to vector<2x16xf32>
    %407 = arith.divf %404, %406 : vector<2x16xf32>
    %408 = vector.shape_cast %407 : vector<2x16xf32> to vector<2x16x1xf32>
    %409 = vector.broadcast %408 : vector<2x16x1xf32> to vector<2x16x16xf32>
    %410 = arith.mulf %393, %409 : vector<2x16x16xf32>
    %cst_51 = arith.constant dense<0.000000e+00> : vector<2x16xf32>
    %411 = vector.multi_reduction <add>, %410, %cst_51 [1] : vector<2x16x16xf32> to vector<2x16xf32>
    %cst_52 = arith.constant dense<0xFF800000> : vector<2xf32>
    %412 = vector.multi_reduction <maximumf>, %411, %cst_52 [1] : vector<2x16xf32> to vector<2xf32>
    %413 = vector.shape_cast %412 : vector<2xf32> to vector<2x1xf32>
    %414 = vector.broadcast %413 : vector<2x1xf32> to vector<2x16xf32>
    %415 = arith.subf %411, %414 : vector<2x16xf32>
    %416 = math.exp %415 : vector<2x16xf32>
    %cst_53 = arith.constant dense<0.000000e+00> : vector<2xf32>
    %417 = vector.multi_reduction <add>, %416, %cst_53 [1] : vector<2x16xf32> to vector<2xf32>
    %418 = vector.shape_cast %417 : vector<2xf32> to vector<2x1xf32>
    %cst_54 = arith.constant 1.000000e+00 : f32
    %419 = vector.broadcast %cst_54 : f32 to vector<2x1xf32>
    %420 = arith.divf %419, %418 : vector<2x1xf32>
    %421 = vector.broadcast %420 : vector<2x1xf32> to vector<2x16xf32>
    %422 = arith.mulf %416, %421 : vector<2x16xf32>
    %423 = vector.shape_cast %422 : vector<2x16xf32> to vector<2x1x16xf32>
    %424 = vector.broadcast %423 : vector<2x1x16xf32> to vector<2x16x16xf32>
    %425 = arith.mulf %424, %393 : vector<2x16x16xf32>
    %cst_55 = arith.constant dense<0.000000e+00> : vector<2x16xf32>
    %426 = vector.multi_reduction <add>, %425, %cst_55 [2] : vector<2x16x16xf32> to vector<2x16xf32>
    %427 = arith.mulf %426, %426 : vector<2x16xf32>
    %cst_56 = arith.constant dense<0.000000e+00> : vector<2xf32>
    %428 = vector.multi_reduction <add>, %427, %cst_56 [1] : vector<2x16xf32> to vector<2xf32>
    %429 = vector.shape_cast %428 : vector<2xf32> to vector<2x1xf32>
    %cst_57 = arith.constant 1.000000e+00 : f32
    %430 = vector.broadcast %cst_57 : f32 to vector<2x1xf32>
    %431 = arith.addf %430, %429 : vector<2x1xf32>
    %432 = arith.divf %429, %431 : vector<2x1xf32>
    %433 = vector.broadcast %432 : vector<2x1xf32> to vector<2x16xf32>
    %434 = arith.mulf %433, %426 : vector<2x16xf32>
    %435 = math.sqrt %429 : vector<2x1xf32>
    %436 = vector.broadcast %435 : vector<2x1xf32> to vector<2x16xf32>
    %437 = arith.divf %434, %436 : vector<2x16xf32>
    %438 = vector.shape_cast %437 : vector<2x16xf32> to vector<2x16x1xf32>
    %439 = vector.broadcast %438 : vector<2x16x1xf32> to vector<2x16x16xf32>
    %440 = arith.mulf %393, %439 : vector<2x16x16xf32>
    %cst_58 = arith.constant dense<0.000000e+00> : vector<2x16xf32>
    %441 = vector.multi_reduction <add>, %440, %cst_58 [1] : vector<2x16x16xf32> to vector<2x16xf32>
    %442 = arith.addf %411, %441 : vector<2x16xf32>
    %cst_59 = arith.constant dense<0xFF800000> : vector<2xf32>
    %443 = vector.multi_reduction <maximumf>, %442, %cst_59 [1] : vector<2x16xf32> to vector<2xf32>
    %444 = vector.shape_cast %443 : vector<2xf32> to vector<2x1xf32>
    %445 = vector.broadcast %444 : vector<2x1xf32> to vector<2x16xf32>
    %446 = arith.subf %442, %445 : vector<2x16xf32>
    %447 = math.exp %446 : vector<2x16xf32>
    %cst_60 = arith.constant dense<0.000000e+00> : vector<2xf32>
    %448 = vector.multi_reduction <add>, %447, %cst_60 [1] : vector<2x16xf32> to vector<2xf32>
    %449 = vector.shape_cast %448 : vector<2xf32> to vector<2x1xf32>
    %cst_61 = arith.constant 1.000000e+00 : f32
    %450 = vector.broadcast %cst_61 : f32 to vector<2x1xf32>
    %451 = arith.divf %450, %449 : vector<2x1xf32>
    %452 = vector.broadcast %451 : vector<2x1xf32> to vector<2x16xf32>
    %453 = arith.mulf %447, %452 : vector<2x16xf32>
    %454 = vector.shape_cast %453 : vector<2x16xf32> to vector<2x1x16xf32>
    %455 = vector.broadcast %454 : vector<2x1x16xf32> to vector<2x16x16xf32>
    %456 = arith.mulf %455, %393 : vector<2x16x16xf32>
    %cst_62 = arith.constant dense<0.000000e+00> : vector<2x16xf32>
    %457 = vector.multi_reduction <add>, %456, %cst_62 [2] : vector<2x16x16xf32> to vector<2x16xf32>
    %458 = arith.mulf %457, %457 : vector<2x16xf32>
    %cst_63 = arith.constant dense<0.000000e+00> : vector<2xf32>
    %459 = vector.multi_reduction <add>, %458, %cst_63 [1] : vector<2x16xf32> to vector<2xf32>
    %460 = vector.shape_cast %459 : vector<2xf32> to vector<2x1xf32>
    %cst_64 = arith.constant 1.000000e+00 : f32
    %461 = vector.broadcast %cst_64 : f32 to vector<2x1xf32>
    %462 = arith.addf %461, %460 : vector<2x1xf32>
    %463 = arith.divf %460, %462 : vector<2x1xf32>
    %464 = vector.broadcast %463 : vector<2x1xf32> to vector<2x16xf32>
    %465 = arith.mulf %464, %457 : vector<2x16xf32>
    %466 = math.sqrt %460 : vector<2x1xf32>
    %467 = vector.broadcast %466 : vector<2x1xf32> to vector<2x16xf32>
    %468 = arith.divf %465, %467 : vector<2x16xf32>
    %c3 = arith.constant 3 : index
    %c0_65 = arith.constant 0 : index
    %c0_66 = arith.constant 0 : index
    %c0_67 = arith.constant 0 : index
    %469 = vector.load %arg2[%c3, %c0_65, %c0_66, %c0_67] : memref<4x8x16x16xf32, #tpu.memory_space<vmem>>, vector<1x8x16x16xf32>
    %470 = vector.shape_cast %469 : vector<1x8x16x16xf32> to vector<8x16x16xf32>
    %471 = vector.extract_strided_slice %0 {offsets = [0, 0, 0], sizes = [2, 1, 16], strides = [1, 1, 1]} : vector<2x8x16xf32> to vector<2x1x16xf32>
    %472 = vector.shape_cast %471 : vector<2x1x16xf32> to vector<2x16xf32>
    %473 = vector.shape_cast %472 : vector<2x16xf32> to vector<2x1x16xf32>
    %474 = vector.extract_strided_slice %470 {offsets = [0, 0, 0], sizes = [1, 16, 16], strides = [1, 1, 1]} : vector<8x16x16xf32> to vector<1x16x16xf32>
    %475 = vector.shape_cast %474 : vector<1x16x16xf32> to vector<16x16xf32>
    %476 = vector.shape_cast %475 : vector<16x16xf32> to vector<1x16x16xf32>
    %477 = vector.broadcast %473 : vector<2x1x16xf32> to vector<2x16x16xf32>
    %478 = vector.broadcast %476 : vector<1x16x16xf32> to vector<2x16x16xf32>
    %479 = arith.mulf %477, %478 : vector<2x16x16xf32>
    %480 = vector.extract_strided_slice %0 {offsets = [0, 1, 0], sizes = [2, 1, 16], strides = [1, 1, 1]} : vector<2x8x16xf32> to vector<2x1x16xf32>
    %481 = vector.shape_cast %480 : vector<2x1x16xf32> to vector<2x16xf32>
    %482 = vector.shape_cast %481 : vector<2x16xf32> to vector<2x1x16xf32>
    %483 = vector.extract_strided_slice %470 {offsets = [1, 0, 0], sizes = [1, 16, 16], strides = [1, 1, 1]} : vector<8x16x16xf32> to vector<1x16x16xf32>
    %484 = vector.shape_cast %483 : vector<1x16x16xf32> to vector<16x16xf32>
    %485 = vector.shape_cast %484 : vector<16x16xf32> to vector<1x16x16xf32>
    %486 = vector.broadcast %482 : vector<2x1x16xf32> to vector<2x16x16xf32>
    %487 = vector.broadcast %485 : vector<1x16x16xf32> to vector<2x16x16xf32>
    %488 = arith.mulf %486, %487 : vector<2x16x16xf32>
    %489 = arith.addf %479, %488 : vector<2x16x16xf32>
    %490 = vector.extract_strided_slice %0 {offsets = [0, 2, 0], sizes = [2, 1, 16], strides = [1, 1, 1]} : vector<2x8x16xf32> to vector<2x1x16xf32>
    %491 = vector.shape_cast %490 : vector<2x1x16xf32> to vector<2x16xf32>
    %492 = vector.shape_cast %491 : vector<2x16xf32> to vector<2x1x16xf32>
    %493 = vector.extract_strided_slice %470 {offsets = [2, 0, 0], sizes = [1, 16, 16], strides = [1, 1, 1]} : vector<8x16x16xf32> to vector<1x16x16xf32>
    %494 = vector.shape_cast %493 : vector<1x16x16xf32> to vector<16x16xf32>
    %495 = vector.shape_cast %494 : vector<16x16xf32> to vector<1x16x16xf32>
    %496 = vector.broadcast %492 : vector<2x1x16xf32> to vector<2x16x16xf32>
    %497 = vector.broadcast %495 : vector<1x16x16xf32> to vector<2x16x16xf32>
    %498 = arith.mulf %496, %497 : vector<2x16x16xf32>
    %499 = arith.addf %489, %498 : vector<2x16x16xf32>
    %500 = vector.extract_strided_slice %0 {offsets = [0, 3, 0], sizes = [2, 1, 16], strides = [1, 1, 1]} : vector<2x8x16xf32> to vector<2x1x16xf32>
    %501 = vector.shape_cast %500 : vector<2x1x16xf32> to vector<2x16xf32>
    %502 = vector.shape_cast %501 : vector<2x16xf32> to vector<2x1x16xf32>
    %503 = vector.extract_strided_slice %470 {offsets = [3, 0, 0], sizes = [1, 16, 16], strides = [1, 1, 1]} : vector<8x16x16xf32> to vector<1x16x16xf32>
    %504 = vector.shape_cast %503 : vector<1x16x16xf32> to vector<16x16xf32>
    %505 = vector.shape_cast %504 : vector<16x16xf32> to vector<1x16x16xf32>
    %506 = vector.broadcast %502 : vector<2x1x16xf32> to vector<2x16x16xf32>
    %507 = vector.broadcast %505 : vector<1x16x16xf32> to vector<2x16x16xf32>
    %508 = arith.mulf %506, %507 : vector<2x16x16xf32>
    %509 = arith.addf %499, %508 : vector<2x16x16xf32>
    %510 = vector.extract_strided_slice %0 {offsets = [0, 4, 0], sizes = [2, 1, 16], strides = [1, 1, 1]} : vector<2x8x16xf32> to vector<2x1x16xf32>
    %511 = vector.shape_cast %510 : vector<2x1x16xf32> to vector<2x16xf32>
    %512 = vector.shape_cast %511 : vector<2x16xf32> to vector<2x1x16xf32>
    %513 = vector.extract_strided_slice %470 {offsets = [4, 0, 0], sizes = [1, 16, 16], strides = [1, 1, 1]} : vector<8x16x16xf32> to vector<1x16x16xf32>
    %514 = vector.shape_cast %513 : vector<1x16x16xf32> to vector<16x16xf32>
    %515 = vector.shape_cast %514 : vector<16x16xf32> to vector<1x16x16xf32>
    %516 = vector.broadcast %512 : vector<2x1x16xf32> to vector<2x16x16xf32>
    %517 = vector.broadcast %515 : vector<1x16x16xf32> to vector<2x16x16xf32>
    %518 = arith.mulf %516, %517 : vector<2x16x16xf32>
    %519 = arith.addf %509, %518 : vector<2x16x16xf32>
    %520 = vector.extract_strided_slice %0 {offsets = [0, 5, 0], sizes = [2, 1, 16], strides = [1, 1, 1]} : vector<2x8x16xf32> to vector<2x1x16xf32>
    %521 = vector.shape_cast %520 : vector<2x1x16xf32> to vector<2x16xf32>
    %522 = vector.shape_cast %521 : vector<2x16xf32> to vector<2x1x16xf32>
    %523 = vector.extract_strided_slice %470 {offsets = [5, 0, 0], sizes = [1, 16, 16], strides = [1, 1, 1]} : vector<8x16x16xf32> to vector<1x16x16xf32>
    %524 = vector.shape_cast %523 : vector<1x16x16xf32> to vector<16x16xf32>
    %525 = vector.shape_cast %524 : vector<16x16xf32> to vector<1x16x16xf32>
    %526 = vector.broadcast %522 : vector<2x1x16xf32> to vector<2x16x16xf32>
    %527 = vector.broadcast %525 : vector<1x16x16xf32> to vector<2x16x16xf32>
    %528 = arith.mulf %526, %527 : vector<2x16x16xf32>
    %529 = arith.addf %519, %528 : vector<2x16x16xf32>
    %530 = vector.extract_strided_slice %0 {offsets = [0, 6, 0], sizes = [2, 1, 16], strides = [1, 1, 1]} : vector<2x8x16xf32> to vector<2x1x16xf32>
    %531 = vector.shape_cast %530 : vector<2x1x16xf32> to vector<2x16xf32>
    %532 = vector.shape_cast %531 : vector<2x16xf32> to vector<2x1x16xf32>
    %533 = vector.extract_strided_slice %470 {offsets = [6, 0, 0], sizes = [1, 16, 16], strides = [1, 1, 1]} : vector<8x16x16xf32> to vector<1x16x16xf32>
    %534 = vector.shape_cast %533 : vector<1x16x16xf32> to vector<16x16xf32>
    %535 = vector.shape_cast %534 : vector<16x16xf32> to vector<1x16x16xf32>
    %536 = vector.broadcast %532 : vector<2x1x16xf32> to vector<2x16x16xf32>
    %537 = vector.broadcast %535 : vector<1x16x16xf32> to vector<2x16x16xf32>
    %538 = arith.mulf %536, %537 : vector<2x16x16xf32>
    %539 = arith.addf %529, %538 : vector<2x16x16xf32>
    %540 = vector.extract_strided_slice %0 {offsets = [0, 7, 0], sizes = [2, 1, 16], strides = [1, 1, 1]} : vector<2x8x16xf32> to vector<2x1x16xf32>
    %541 = vector.shape_cast %540 : vector<2x1x16xf32> to vector<2x16xf32>
    %542 = vector.shape_cast %541 : vector<2x16xf32> to vector<2x1x16xf32>
    %543 = vector.extract_strided_slice %470 {offsets = [7, 0, 0], sizes = [1, 16, 16], strides = [1, 1, 1]} : vector<8x16x16xf32> to vector<1x16x16xf32>
    %544 = vector.shape_cast %543 : vector<1x16x16xf32> to vector<16x16xf32>
    %545 = vector.shape_cast %544 : vector<16x16xf32> to vector<1x16x16xf32>
    %546 = vector.broadcast %542 : vector<2x1x16xf32> to vector<2x16x16xf32>
    %547 = vector.broadcast %545 : vector<1x16x16xf32> to vector<2x16x16xf32>
    %548 = arith.mulf %546, %547 : vector<2x16x16xf32>
    %549 = arith.addf %539, %548 : vector<2x16x16xf32>
    %cst_68 = arith.constant dense<0.000000e+00> : vector<2x16xf32>
    %550 = vector.multi_reduction <add>, %549, %cst_68 [2] : vector<2x16x16xf32> to vector<2x16xf32>
    %cst_69 = arith.constant 6.250000e-02 : f32
    %551 = vector.broadcast %cst_69 : f32 to vector<2x16xf32>
    %552 = arith.mulf %550, %551 : vector<2x16xf32>
    %553 = arith.mulf %552, %552 : vector<2x16xf32>
    %cst_70 = arith.constant dense<0.000000e+00> : vector<2xf32>
    %554 = vector.multi_reduction <add>, %553, %cst_70 [1] : vector<2x16xf32> to vector<2xf32>
    %555 = vector.shape_cast %554 : vector<2xf32> to vector<2x1xf32>
    %cst_71 = arith.constant 1.000000e+00 : f32
    %556 = vector.broadcast %cst_71 : f32 to vector<2x1xf32>
    %557 = arith.addf %556, %555 : vector<2x1xf32>
    %558 = arith.divf %555, %557 : vector<2x1xf32>
    %559 = vector.broadcast %558 : vector<2x1xf32> to vector<2x16xf32>
    %560 = arith.mulf %559, %552 : vector<2x16xf32>
    %561 = math.sqrt %555 : vector<2x1xf32>
    %562 = vector.broadcast %561 : vector<2x1xf32> to vector<2x16xf32>
    %563 = arith.divf %560, %562 : vector<2x16xf32>
    %564 = vector.shape_cast %563 : vector<2x16xf32> to vector<2x16x1xf32>
    %565 = vector.broadcast %564 : vector<2x16x1xf32> to vector<2x16x16xf32>
    %566 = arith.mulf %549, %565 : vector<2x16x16xf32>
    %cst_72 = arith.constant dense<0.000000e+00> : vector<2x16xf32>
    %567 = vector.multi_reduction <add>, %566, %cst_72 [1] : vector<2x16x16xf32> to vector<2x16xf32>
    %cst_73 = arith.constant dense<0xFF800000> : vector<2xf32>
    %568 = vector.multi_reduction <maximumf>, %567, %cst_73 [1] : vector<2x16xf32> to vector<2xf32>
    %569 = vector.shape_cast %568 : vector<2xf32> to vector<2x1xf32>
    %570 = vector.broadcast %569 : vector<2x1xf32> to vector<2x16xf32>
    %571 = arith.subf %567, %570 : vector<2x16xf32>
    %572 = math.exp %571 : vector<2x16xf32>
    %cst_74 = arith.constant dense<0.000000e+00> : vector<2xf32>
    %573 = vector.multi_reduction <add>, %572, %cst_74 [1] : vector<2x16xf32> to vector<2xf32>
    %574 = vector.shape_cast %573 : vector<2xf32> to vector<2x1xf32>
    %cst_75 = arith.constant 1.000000e+00 : f32
    %575 = vector.broadcast %cst_75 : f32 to vector<2x1xf32>
    %576 = arith.divf %575, %574 : vector<2x1xf32>
    %577 = vector.broadcast %576 : vector<2x1xf32> to vector<2x16xf32>
    %578 = arith.mulf %572, %577 : vector<2x16xf32>
    %579 = vector.shape_cast %578 : vector<2x16xf32> to vector<2x1x16xf32>
    %580 = vector.broadcast %579 : vector<2x1x16xf32> to vector<2x16x16xf32>
    %581 = arith.mulf %580, %549 : vector<2x16x16xf32>
    %cst_76 = arith.constant dense<0.000000e+00> : vector<2x16xf32>
    %582 = vector.multi_reduction <add>, %581, %cst_76 [2] : vector<2x16x16xf32> to vector<2x16xf32>
    %583 = arith.mulf %582, %582 : vector<2x16xf32>
    %cst_77 = arith.constant dense<0.000000e+00> : vector<2xf32>
    %584 = vector.multi_reduction <add>, %583, %cst_77 [1] : vector<2x16xf32> to vector<2xf32>
    %585 = vector.shape_cast %584 : vector<2xf32> to vector<2x1xf32>
    %cst_78 = arith.constant 1.000000e+00 : f32
    %586 = vector.broadcast %cst_78 : f32 to vector<2x1xf32>
    %587 = arith.addf %586, %585 : vector<2x1xf32>
    %588 = arith.divf %585, %587 : vector<2x1xf32>
    %589 = vector.broadcast %588 : vector<2x1xf32> to vector<2x16xf32>
    %590 = arith.mulf %589, %582 : vector<2x16xf32>
    %591 = math.sqrt %585 : vector<2x1xf32>
    %592 = vector.broadcast %591 : vector<2x1xf32> to vector<2x16xf32>
    %593 = arith.divf %590, %592 : vector<2x16xf32>
    %594 = vector.shape_cast %593 : vector<2x16xf32> to vector<2x16x1xf32>
    %595 = vector.broadcast %594 : vector<2x16x1xf32> to vector<2x16x16xf32>
    %596 = arith.mulf %549, %595 : vector<2x16x16xf32>
    %cst_79 = arith.constant dense<0.000000e+00> : vector<2x16xf32>
    %597 = vector.multi_reduction <add>, %596, %cst_79 [1] : vector<2x16x16xf32> to vector<2x16xf32>
    %598 = arith.addf %567, %597 : vector<2x16xf32>
    %cst_80 = arith.constant dense<0xFF800000> : vector<2xf32>
    %599 = vector.multi_reduction <maximumf>, %598, %cst_80 [1] : vector<2x16xf32> to vector<2xf32>
    %600 = vector.shape_cast %599 : vector<2xf32> to vector<2x1xf32>
    %601 = vector.broadcast %600 : vector<2x1xf32> to vector<2x16xf32>
    %602 = arith.subf %598, %601 : vector<2x16xf32>
    %603 = math.exp %602 : vector<2x16xf32>
    %cst_81 = arith.constant dense<0.000000e+00> : vector<2xf32>
    %604 = vector.multi_reduction <add>, %603, %cst_81 [1] : vector<2x16xf32> to vector<2xf32>
    %605 = vector.shape_cast %604 : vector<2xf32> to vector<2x1xf32>
    %cst_82 = arith.constant 1.000000e+00 : f32
    %606 = vector.broadcast %cst_82 : f32 to vector<2x1xf32>
    %607 = arith.divf %606, %605 : vector<2x1xf32>
    %608 = vector.broadcast %607 : vector<2x1xf32> to vector<2x16xf32>
    %609 = arith.mulf %603, %608 : vector<2x16xf32>
    %610 = vector.shape_cast %609 : vector<2x16xf32> to vector<2x1x16xf32>
    %611 = vector.broadcast %610 : vector<2x1x16xf32> to vector<2x16x16xf32>
    %612 = arith.mulf %611, %549 : vector<2x16x16xf32>
    %cst_83 = arith.constant dense<0.000000e+00> : vector<2x16xf32>
    %613 = vector.multi_reduction <add>, %612, %cst_83 [2] : vector<2x16x16xf32> to vector<2x16xf32>
    %614 = arith.mulf %613, %613 : vector<2x16xf32>
    %cst_84 = arith.constant dense<0.000000e+00> : vector<2xf32>
    %615 = vector.multi_reduction <add>, %614, %cst_84 [1] : vector<2x16xf32> to vector<2xf32>
    %616 = vector.shape_cast %615 : vector<2xf32> to vector<2x1xf32>
    %cst_85 = arith.constant 1.000000e+00 : f32
    %617 = vector.broadcast %cst_85 : f32 to vector<2x1xf32>
    %618 = arith.addf %617, %616 : vector<2x1xf32>
    %619 = arith.divf %616, %618 : vector<2x1xf32>
    %620 = vector.broadcast %619 : vector<2x1xf32> to vector<2x16xf32>
    %621 = arith.mulf %620, %613 : vector<2x16xf32>
    %622 = math.sqrt %616 : vector<2x1xf32>
    %623 = vector.broadcast %622 : vector<2x1xf32> to vector<2x16xf32>
    %624 = arith.divf %621, %623 : vector<2x16xf32>
    %625 = tpu.concatenate %156, %312, %468, %624 in 1 : vector<2x16xf32>, vector<2x16xf32>, vector<2x16xf32>, vector<2x16xf32> -> vector<2x64xf32>
    %c0_86 = arith.constant 0 : index
    %c0_87 = arith.constant 0 : index
    %626 = vector.load %arg3[%c0_86, %c0_87] : memref<2x64xf32, #tpu.memory_space<vmem>>, vector<2x64xf32>
    tpu.vector_store %arg3[%c0_86, %c0_87], %625 {strides = array<i32>} : memref<2x64xf32, #tpu.memory_space<vmem>>, vector<2x64xf32>,
    return
  }
  func.func @transform_0(%arg0: i32) -> (i32, i32, i32) {
    %c0_i32 = arith.constant 0 : i32
    %c0_i32_0 = arith.constant 0 : i32
    %c0_i32_1 = arith.constant 0 : i32
    return %arg0, %c0_i32, %c0_i32_0 : i32, i32, i32
  }
  func.func @transform_1(%arg0: i32) -> (i32, i32, i32, i32) {
    %c0_i32 = arith.constant 0 : i32
    %c0_i32_0 = arith.constant 0 : i32
    %c0_i32_1 = arith.constant 0 : i32
    %c0_i32_2 = arith.constant 0 : i32
    %c0_i32_3 = arith.constant 0 : i32
    return %c0_i32, %c0_i32_0, %c0_i32_1, %c0_i32_2 : i32, i32, i32, i32
  }
  func.func @transform_2(%arg0: i32) -> (i32, i32) {
    %c0_i32 = arith.constant 0 : i32
    %c0_i32_0 = arith.constant 0 : i32
    return %arg0, %c0_i32 : i32, i32
  }
}

</mosaic_0001>

<llo_original>
// kernel: tpu_custom_call.1
$region0: #{tpu_custom_call.1}
  #allocation0 [shape = 'u32[]', space=smem, size = 0x4, offset = 0x4, fixed_abs, tag = 'smem constant byte address 0x4 - core index']
  #allocation1 [shape = 'u32[144,128]{1,0:T(1,128)}', space=vmem, size = 0x12000, scoped, tag = 'internal scratch']
  %s0 = inlined_call_operand.hbm [shape: f32[2,8,16], index: 0, kind: input, shape index: {}]
  %s1 = inlined_call_operand.hbm [shape: f32[4,8,16,16], index: 1, kind: input, shape index: {}]
  %s2 = inlined_call_operand.hbm [shape: f32[2,64], index: 2, kind: output, shape index: {}]
  %s3 = sld [smem:[#allocation0]]
  $region26: #{tpu_custom_call.1} parent=0
    _
  %s5 = ssub.s32 1, %s3
  %s6 = scalar_select 0, %s5, %s3
  $region1: #{tpu_custom_call.1} parent=0
    #allocation2 [shape = 'u8[8192]{0}', space=vmem, size = 0x2000, scoped, tag = 'input window, operand 0, single buffered']
    #allocation3 [shape = 's32[1]{0}', space=sflag, size = 0x4, scoped, tag = 'scoped memory for tpu_custom_call.1']
    #allocation4 [shape = 's32[1]{0}', space=sflag, size = 0x4, scoped, tag = 'scoped memory for tpu_custom_call.1']
    #allocation5 [shape = 'u8[262144]{0}', space=vmem, size = 0x40000, scoped, tag = 'input window, operand 1, single buffered']
    #allocation6 [shape = 's32[1]{0}', space=sflag, size = 0x4, scoped, tag = 'scoped memory for tpu_custom_call.1']
    #allocation7 [shape = 'u8[1024]{0}', space=vmem, size = 0x400, scoped, tag = 'output window, operand 0, single buffered']
    %7 = vsyncpa [#allocation3], 0
    %8 = vsyncpa [#allocation6], 0
    %9 = vsyncpa [#allocation4], 0
    // Predicated region
    $region2: #{tpu_custom_call.1} parent=1 // pred_check
      _
    $region3: #{tpu_custom_call.1} parent=1 // pred_check_branch
      %11 = sbr.rel (0) target = $region5
    $region4: #{tpu_custom_call.1} parent=1 // pred_region
      %s13 = ssub.s32 256, 256
      %14 = vsyncadd [#allocation3], %s13
      %s15 = sshll.u32 [#allocation2], 4
      %s16 = int_to_ptr.vmem [resolvable:$true] %s15
      %21 = dma.hbm_to_vmem [thread:$0]  %s0, 256, %s16, [#allocation3], 128, 128, 8
    $region5: #{tpu_custom_call.1} parent=1 // pred_fallthru
      _
    // Predicated region
    $region6: #{tpu_custom_call.1} parent=1 // pred_check
      _
    $region7: #{tpu_custom_call.1} parent=1 // pred_check_branch
      %23 = sbr.rel (0) target = $region9
    $region8: #{tpu_custom_call.1} parent=1 // pred_region
      %s25 = ssub.s32 8192, 8192
      %26 = vsyncadd [#allocation6], %s25
      %s27 = sshll.u32 [#allocation5], 4
      %s28 = int_to_ptr.vmem [resolvable:$true] %s27
      %33 = dma.hbm_to_vmem [thread:$0]  %s1, 8192, %s28, [#allocation6], 128, 128, 8
    $region9: #{tpu_custom_call.1} parent=1 // pred_fallthru
      _
    // Predicated region
    $region10: #{tpu_custom_call.1} parent=1 // pred_check
      _
    $region11: #{tpu_custom_call.1} parent=1 // pred_check_branch
      %35 = sbr.rel (0) target = $region13
    $region12: #{tpu_custom_call.1} parent=1 // pred_region
      %36 = dma.done [#allocation3], 256
    $region13: #{tpu_custom_call.1} parent=1 // pred_fallthru
      _
    // Predicated region
    $region14: #{tpu_custom_call.1} parent=1 // pred_check
      _
    $region15: #{tpu_custom_call.1} parent=1 // pred_check_branch
      %38 = sbr.rel (0) target = $region17
    $region16: #{tpu_custom_call.1} parent=1 // pred_region
      %39 = dma.done [#allocation6], 8192
    $region17: #{tpu_custom_call.1} parent=1 // pred_fallthru
      _
    %v40 = vld [vmem:[#allocation2] sm:$0xff]
    %v41 = vld [vmem:[#allocation2 + $0x8] sm:$0xff]
    %v42 = vld [vmem:[#allocation5] sm:$0xff]
    %v43 = vld [vmem:[#allocation5 + $0x8] sm:$0xff]
    %v44 = vld [vmem:[#allocation5 + $0x10] sm:$0xff]
    %v45 = vld [vmem:[#allocation5 + $0x18] sm:$0xff]
    %v46 = vld [vmem:[#allocation5 + $0x20] sm:$0xff]
    %v47 = vld [vmem:[#allocation5 + $0x28] sm:$0xff]
    %v48 = vld [vmem:[#allocation5 + $0x30] sm:$0xff]
    %v49 = vld [vmem:[#allocation5 + $0x38] sm:$0xff]
    %v50 = vld [vmem:[#allocation5 + $0x40] sm:$0xff]
    %v51 = vld [vmem:[#allocation5 + $0x48] sm:$0xff]
    %v52 = vld [vmem:[#allocation5 + $0x50] sm:$0xff]
    %v53 = vld [vmem:[#allocation5 + $0x58] sm:$0xff]
    %v54 = vld [vmem:[#allocation5 + $0x60] sm:$0xff]
    %v55 = vld [vmem:[#allocation5 + $0x68] sm:$0xff]
    %v56 = vld [vmem:[#allocation5 + $0x70] sm:$0xff]
    %v57 = vld [vmem:[#allocation5 + $0x78] sm:$0xff]
    %v58 = vlaneseq
    %v59 = vshrl.u32 %v58, 7
    %v60 = vsub.s32 0, %v59
    %v61 = vrot.slane %v40, %v60
    %v62 = vlaneseq
    %v63 = vshrl.u32 %v62, 7
    %v64 = vsub.s32 0, %v63
    %v65 = vrot.slane %v41, %v64
    %v66 = vmul.f32 %v61, %v42
    %v67 = vmul.f32 %v61, %v43
    %v68 = vmul.f32 %v65, %v42
    %v69 = vmul.f32 %v65, %v43
    %v70 = vlaneseq
    %v71 = vshrl.u32 %v70, 7
    %v72 = vsub.s32 1, %v71
    %v73 = vrot.slane %v40, %v72
    %v74 = vlaneseq
    %v75 = vshrl.u32 %v74, 7
    %v76 = vsub.s32 1, %v75
    %v77 = vrot.slane %v41, %v76
    %v78 = vmul.f32 %v73, %v44
    %v79 = vmul.f32 %v73, %v45
    %v80 = vmul.f32 %v77, %v44
    %v81 = vmul.f32 %v77, %v45
    %v82 = vadd.f32 %v66, %v78
    %v83 = vadd.f32 %v67, %v79
    %v84 = vadd.f32 %v68, %v80
    %v85 = vadd.f32 %v69, %v81
    %v86 = vlaneseq
    %v87 = vshrl.u32 %v86, 7
    %v88 = vsub.s32 2, %v87
    %v89 = vrot.slane %v40, %v88
    %v90 = vlaneseq
    %v91 = vshrl.u32 %v90, 7
    %v92 = vsub.s32 2, %v91
    %v93 = vrot.slane %v41, %v92
    %v94 = vmul.f32 %v89, %v46
    %v95 = vmul.f32 %v89, %v47
    %v96 = vmul.f32 %v93, %v46
    %v97 = vmul.f32 %v93, %v47
    %v98 = vadd.f32 %v82, %v94
    %v99 = vadd.f32 %v83, %v95
    %v100 = vadd.f32 %v84, %v96
    %v101 = vadd.f32 %v85, %v97
    %v102 = vlaneseq
    %v103 = vshrl.u32 %v102, 7
    %v104 = vsub.s32 3, %v103
    %v105 = vrot.slane %v40, %v104
    %v106 = vlaneseq
    %v107 = vshrl.u32 %v106, 7
    %v108 = vsub.s32 3, %v107
    %v109 = vrot.slane %v41, %v108
    %v110 = vmul.f32 %v105, %v48
    %v111 = vmul.f32 %v105, %v49
    %v112 = vmul.f32 %v109, %v48
    %v113 = vmul.f32 %v109, %v49
    %v114 = vadd.f32 %v98, %v110
    %v115 = vadd.f32 %v99, %v111
    %v116 = vadd.f32 %v100, %v112
    %v117 = vadd.f32 %v101, %v113
    %v118 = vlaneseq
    %v119 = vshrl.u32 %v118, 7
    %v120 = vsub.s32 4, %v119
    %v121 = vrot.slane %v40, %v120
    %v122 = vlaneseq
    %v123 = vshrl.u32 %v122, 7
    %v124 = vsub.s32 4, %v123
    %v125 = vrot.slane %v41, %v124
    %v126 = vmul.f32 %v121, %v50
    %v127 = vmul.f32 %v121, %v51
    %v128 = vmul.f32 %v125, %v50
    %v129 = vmul.f32 %v125, %v51
    %v130 = vadd.f32 %v114, %v126
    %v131 = vadd.f32 %v115, %v127
    %v132 = vadd.f32 %v116, %v128
    %v133 = vadd.f32 %v117, %v129
    %v134 = vlaneseq
    %v135 = vshrl.u32 %v134, 7
    %v136 = vsub.s32 5, %v135
    %v137 = vrot.slane %v40, %v136
    %v138 = vlaneseq
    %v139 = vshrl.u32 %v138, 7
    %v140 = vsub.s32 5, %v139
    %v141 = vrot.slane %v41, %v140
    %v142 = vmul.f32 %v137, %v52
    %v143 = vmul.f32 %v137, %v53
    %v144 = vmul.f32 %v141, %v52
    %v145 = vmul.f32 %v141, %v53
    %v146 = vadd.f32 %v130, %v142
    %v147 = vadd.f32 %v131, %v143
    %v148 = vadd.f32 %v132, %v144
    %v149 = vadd.f32 %v133, %v145
    %v150 = vlaneseq
    %v151 = vshrl.u32 %v150, 7
    %v152 = vsub.s32 6, %v151
    %v153 = vrot.slane %v40, %v152
    %v154 = vlaneseq
    %v155 = vshrl.u32 %v154, 7
    %v156 = vsub.s32 6, %v155
    %v157 = vrot.slane %v41, %v156
    %v158 = vmul.f32 %v153, %v54
    %v159 = vmul.f32 %v153, %v55
    %v160 = vmul.f32 %v157, %v54
    %v161 = vmul.f32 %v157, %v55
    %v162 = vadd.f32 %v146, %v158
    %v163 = vadd.f32 %v147, %v159
    %v164 = vadd.f32 %v148, %v160
    %v165 = vadd.f32 %v149, %v161
    %v166 = vlaneseq
    %v167 = vshrl.u32 %v166, 7
    %v168 = vsub.s32 7, %v167
    %v169 = vrot.slane %v40, %v168
    %v170 = vlaneseq
    %v171 = vshrl.u32 %v170, 7
    %v172 = vsub.s32 7, %v171
    %v173 = vrot.slane %v41, %v172
    %v174 = vmul.f32 %v169, %v56
    %v175 = vmul.f32 %v169, %v57
    %v176 = vmul.f32 %v173, %v56
    %v177 = vmul.f32 %v173, %v57
    %v178 = vadd.f32 %v162, %v174
    %v179 = vadd.f32 %v163, %v175
    %v180 = vadd.f32 %v164, %v176
    %v181 = vadd.f32 %v165, %v177
    %vm182 = vcmask 130048
    %v183 = vsel %vm182, %v178, 0.0
    %184 = vadd.xlane.f32.xlu0 %v183
    %v185 = vpop.xlane.xlu0 %184
    %v186 = vsel %vm182, %v179, 0.0
    %187 = vadd.xlane.f32.xlu0 %v186
    %v188 = vpop.xlane.xlu0 %187
    %v189 = vsel %vm182, %v180, 0.0
    %190 = vadd.xlane.f32.xlu0 %v189
    %v191 = vpop.xlane.xlu0 %190
    %v192 = vsel %vm182, %v181, 0.0
    %193 = vadd.xlane.f32.xlu0 %v192
    %v194 = vpop.xlane.xlu0 %193
    %v195 = vmul.f32 %v185, 0.0625
    %v196 = vmul.f32 %v188, 0.0625
    %v197 = vmul.f32 %v191, 0.0625
    %v198 = vmul.f32 %v194, 0.0625
    %v199 = vmul.f32 %v195, %v195
    %v200 = vmul.f32 %v196, %v196
    %v201 = vmul.f32 %v197, %v197
    %v202 = vmul.f32 %v198, %v198
    %v207 = vlaneseq
    %v208 = vand.u32 %v207, 127
    %v209 = vlaneseq
    %v210 = vshrl.u32 %v209, 7
    %v211 = vsub.s32 %v208, %v210
    %v212 = vrot.slane %v199, %v211
    %v213 = vadd.s32 %v208, 4294967288
    %v214 = vlaneseq
    %v215 = vshrl.u32 %v214, 7
    %v216 = vsub.s32 %v213, %v215
    %v217 = vrot.slane %v200, %v216
    %vm218 = vcmask 130112
    %v219 = vsel %vm218, %v217, %v212
    %v220 = vlaneseq
    %v221 = vshrl.u32 %v220, 7
    %v222 = vsub.s32 %v208, %v221
    %v223 = vrot.slane %v201, %v222
    %v224 = vlaneseq
    %v225 = vshrl.u32 %v224, 7
    %v226 = vsub.s32 %v213, %v225
    %v227 = vrot.slane %v202, %v226
    %v228 = vsel %vm218, %v227, %v223
    %vm229 = vcmask 1041409
    %v230 = vsel %vm229, %v228, %v219
    %vm232 = vcmask 123904
    %v233 = vsel %vm232, %v230, 0.0
    %234 = vadd.xlane.f32.xlu0 %v233
    %v235 = vpop.xlane.xlu0 %234
    %v236 = vadd.f32 %v235, 1.0
    %v237 = vrcp.pop %v236
    %v238 = vmul.f32 %v235, %v237
    %v243 = vlaneseq
    %v244 = vshrl.u32 %v243, 7
    %v245 = vsub.s32 %v208, %v244
    %v246 = vrot.slane %v195, %v245
    %v247 = vlaneseq
    %v248 = vshrl.u32 %v247, 7
    %v249 = vsub.s32 %v213, %v248
    %v250 = vrot.slane %v196, %v249
    %v251 = vsel %vm218, %v250, %v246
    %v252 = vlaneseq
    %v253 = vshrl.u32 %v252, 7
    %v254 = vsub.s32 %v208, %v253
    %v255 = vrot.slane %v197, %v254
    %v256 = vlaneseq
    %v257 = vshrl.u32 %v256, 7
    %v258 = vsub.s32 %v213, %v257
    %v259 = vrot.slane %v198, %v258
    %v260 = vsel %vm218, %v259, %v255
    %v261 = vsel %vm229, %v260, %v251
    %v263 = vmul.f32 %v238, %v261
    %v264 = vrsqrt.pop %v235
    %v265 = vmul.f32 %v235, %v264
    %vm266 = vcmp.eq.f32.partialorder %v235, inf
    %v267 = vsel %vm266, %v235, %v265
    %vm268 = vcmp.eq.f32.partialorder %v235, 0.0
    %v269 = vand.u32 %v235, 2147483648
    %v270 = vsel %vm268, %v269, %v267
    %v271 = vrcp.pop %v270
    %v272 = vmul.f32 %v263, %v271
    %v273 = vlaneseq
    %v274 = vshrl.u32 %v273, 7
    %v275 = vsub.s32 0, %v274
    %v276 = vrot.slane %v272, %v275
    %278 = vbcast.lane.b32.xlu0 %v276, 256
    %v279 = vpop.permute.xlu0 %278
    %s281 = sor.u32 256, 8
    %282 = vbcast.lane.b32.xlu0 %v276, %s281
    %v283 = vpop.permute.xlu0 %282
    %v284 = vlaneseq
    %v285 = vshrl.u32 %v284, 7
    %v286 = vsub.s32 1, %v285
    %v287 = vrot.slane %v272, %v286
    %289 = vbcast.lane.b32.xlu0 %v287, 256
    %v290 = vpop.permute.xlu0 %289
    %s292 = sor.u32 256, 8
    %293 = vbcast.lane.b32.xlu0 %v287, %s292
    %v294 = vpop.permute.xlu0 %293
    %v295 = vmul.f32 %v178, %v279
    %v296 = vmul.f32 %v179, %v283
    %v297 = vmul.f32 %v180, %v290
    %v298 = vmul.f32 %v181, %v294
    %v299 = vsel %vm182, %v295, 0.0
    %v300 = vsel %vm182, %v296, 0.0
    %v301 = vadd.f32 %v299, %v300
    %v302 = vrot.slane %v301, 4
    %v303 = vadd.f32 %v301, %v302
    %v304 = vrot.slane %v303, 2
    %v305 = vadd.f32 %v303, %v304
    %v306 = vrot.slane %v305, 1
    %v307 = vadd.f32 %v305, %v306
    %v308 = vsel %vm182, %v297, 0.0
    %v309 = vsel %vm182, %v298, 0.0
    %v310 = vadd.f32 %v308, %v309
    %v311 = vrot.slane %v310, 4
    %v312 = vadd.f32 %v310, %v311
    %v313 = vrot.slane %v312, 2
    %v314 = vadd.f32 %v312, %v313
    %v315 = vrot.slane %v314, 1
    %v316 = vadd.f32 %v314, %v315
    %v319 = vsel %vm229, %v316, %v307
    %v321 = vsel %vm232, %v319, -inf
    %322 = vmax.xlane.f32.xlu0 %v321
    %v323 = vpop.xlane.xlu0 %322
    %v325 = vrot.slane %v323, 1
    %v328 = vsub.f32 %v307, %v323
    %v329 = vsub.f32 %v316, %v325
    %v330 = vmul.f32 %v328, 1.442695
    %v331 = vpow.pop %v330
    %v332 = vmul.f32 %v329, 1.442695
    %v333 = vpow.pop %v332
    %v336 = vrot.slane %v333, 7
    %v337 = vsel %vm229, %v336, %v331
    %v339 = vsel %vm232, %v337, 0.0
    %340 = vadd.xlane.f32.xlu0 %v339
    %v341 = vpop.xlane.xlu0 %340
    %v342 = vrcp.pop %v341
    %v343 = vmul.f32 1.0, %v342
    %v345 = vrot.slane %v343, 1
    %v348 = vmul.f32 %v331, %v343
    %v349 = vmul.f32 %v333, %v345
    %v350 = vlaneseq
    %v351 = vshrl.u32 %v350, 7
    %v352 = vsub.s32 0, %v351
    %v353 = vrot.slane %v348, %v352
    %v354 = vlaneseq
    %v355 = vshrl.u32 %v354, 7
    %v356 = vsub.s32 0, %v355
    %v357 = vrot.slane %v349, %v356
    %v358 = vmul.f32 %v353, %v178
    %v359 = vmul.f32 %v353, %v179
    %v360 = vmul.f32 %v357, %v180
    %v361 = vmul.f32 %v357, %v181
    %v362 = vsel %vm182, %v358, 0.0
    %363 = vadd.xlane.f32.xlu0 %v362
    %v364 = vpop.xlane.xlu0 %363
    %v365 = vsel %vm182, %v359, 0.0
    %366 = vadd.xlane.f32.xlu0 %v365
    %v367 = vpop.xlane.xlu0 %366
    %v368 = vsel %vm182, %v360, 0.0
    %369 = vadd.xlane.f32.xlu0 %v368
    %v370 = vpop.xlane.xlu0 %369
    %v371 = vsel %vm182, %v361, 0.0
    %372 = vadd.xlane.f32.xlu0 %v371
    %v373 = vpop.xlane.xlu0 %372
    %v374 = vmul.f32 %v364, %v364
    %v375 = vmul.f32 %v367, %v367
    %v376 = vmul.f32 %v370, %v370
    %v377 = vmul.f32 %v373, %v373
    %v382 = vlaneseq
    %v383 = vshrl.u32 %v382, 7
    %v384 = vsub.s32 %v208, %v383
    %v385 = vrot.slane %v374, %v384
    %v386 = vlaneseq
    %v387 = vshrl.u32 %v386, 7
    %v388 = vsub.s32 %v213, %v387
    %v389 = vrot.slane %v375, %v388
    %v390 = vsel %vm218, %v389, %v385
    %v391 = vlaneseq
    %v392 = vshrl.u32 %v391, 7
    %v393 = vsub.s32 %v208, %v392
    %v394 = vrot.slane %v376, %v393
    %v395 = vlaneseq
    %v396 = vshrl.u32 %v395, 7
    %v397 = vsub.s32 %v213, %v396
    %v398 = vrot.slane %v377, %v397
    %v399 = vsel %vm218, %v398, %v394
    %v400 = vsel %vm229, %v399, %v390
    %v402 = vsel %vm232, %v400, 0.0
    %403 = vadd.xlane.f32.xlu0 %v402
    %v404 = vpop.xlane.xlu0 %403
    %v405 = vadd.f32 %v404, 1.0
    %v406 = vrcp.pop %v405
    %v407 = vmul.f32 %v404, %v406
    %v412 = vlaneseq
    %v413 = vshrl.u32 %v412, 7
    %v414 = vsub.s32 %v208, %v413
    %v415 = vrot.slane %v364, %v414
    %v416 = vlaneseq
    %v417 = vshrl.u32 %v416, 7
    %v418 = vsub.s32 %v213, %v417
    %v419 = vrot.slane %v367, %v418
    %v420 = vsel %vm218, %v419, %v415
    %v421 = vlaneseq
    %v422 = vshrl.u32 %v421, 7
    %v423 = vsub.s32 %v208, %v422
    %v424 = vrot.slane %v370, %v423
    %v425 = vlaneseq
    %v426 = vshrl.u32 %v425, 7
    %v427 = vsub.s32 %v213, %v426
    %v428 = vrot.slane %v373, %v427
    %v429 = vsel %vm218, %v428, %v424
    %v430 = vsel %vm229, %v429, %v420
    %v432 = vmul.f32 %v407, %v430
    %v433 = vrsqrt.pop %v404
    %v434 = vmul.f32 %v404, %v433
    %vm435 = vcmp.eq.f32.partialorder %v404, inf
    %v436 = vsel %vm435, %v404, %v434
    %vm437 = vcmp.eq.f32.partialorder %v404, 0.0
    %v438 = vand.u32 %v404, 2147483648
    %v439 = vsel %vm437, %v438, %v436
    %v440 = vrcp.pop %v439
    %v441 = vmul.f32 %v432, %v440
    %v442 = vlaneseq
    %v443 = vshrl.u32 %v442, 7
    %v444 = vsub.s32 0, %v443
    %v445 = vrot.slane %v441, %v444
    %447 = vbcast.lane.b32.xlu0 %v445, 256
    %v448 = vpop.permute.xlu0 %447
    %s450 = sor.u32 256, 8
    %451 = vbcast.lane.b32.xlu0 %v445, %s450
    %v452 = vpop.permute.xlu0 %451
    %v453 = vlaneseq
    %v454 = vshrl.u32 %v453, 7
    %v455 = vsub.s32 1, %v454
    %v456 = vrot.slane %v441, %v455
    %458 = vbcast.lane.b32.xlu0 %v456, 256
    %v459 = vpop.permute.xlu0 %458
    %s461 = sor.u32 256, 8
    %462 = vbcast.lane.b32.xlu0 %v456, %s461
    %v463 = vpop.permute.xlu0 %462
    %v464 = vmul.f32 %v178, %v448
    %v465 = vmul.f32 %v179, %v452
    %v466 = vmul.f32 %v180, %v459
    %v467 = vmul.f32 %v181, %v463
    %v468 = vsel %vm182, %v464, 0.0
    %v469 = vsel %vm182, %v465, 0.0
    %v470 = vadd.f32 %v468, %v469
    %v471 = vrot.slane %v470, 4
    %v472 = vadd.f32 %v470, %v471
    %v473 = vrot.slane %v472, 2
    %v474 = vadd.f32 %v472, %v473
    %v475 = vrot.slane %v474, 1
    %v476 = vadd.f32 %v474, %v475
    %v477 = vsel %vm182, %v466, 0.0
    %v478 = vsel %vm182, %v467, 0.0
    %v479 = vadd.f32 %v477, %v478
    %v480 = vrot.slane %v479, 4
    %v481 = vadd.f32 %v479, %v480
    %v482 = vrot.slane %v481, 2
    %v483 = vadd.f32 %v481, %v482
    %v484 = vrot.slane %v483, 1
    %v485 = vadd.f32 %v483, %v484
    %v486 = vadd.f32 %v307, %v476
    %v487 = vadd.f32 %v316, %v485
    %v490 = vsel %vm229, %v487, %v486
    %v492 = vsel %vm232, %v490, -inf
    %493 = vmax.xlane.f32.xlu0 %v492
    %v494 = vpop.xlane.xlu0 %493
    %v496 = vrot.slane %v494, 1
    %v499 = vsub.f32 %v486, %v494
    %v500 = vsub.f32 %v487, %v496
    %v501 = vmul.f32 %v499, 1.442695
    %v502 = vpow.pop %v501
    %v503 = vmul.f32 %v500, 1.442695
    %v504 = vpow.pop %v503
    %v507 = vrot.slane %v504, 7
    %v508 = vsel %vm229, %v507, %v502
    %v510 = vsel %vm232, %v508, 0.0
    %511 = vadd.xlane.f32.xlu0 %v510
    %v512 = vpop.xlane.xlu0 %511
    %v513 = vrcp.pop %v512
    %v514 = vmul.f32 1.0, %v513
    %v516 = vrot.slane %v514, 1
    %v519 = vmul.f32 %v502, %v514
    %v520 = vmul.f32 %v504, %v516
    %v521 = vlaneseq
    %v522 = vshrl.u32 %v521, 7
    %v523 = vsub.s32 0, %v522
    %v524 = vrot.slane %v519, %v523
    %v525 = vlaneseq
    %v526 = vshrl.u32 %v525, 7
    %v527 = vsub.s32 0, %v526
    %v528 = vrot.slane %v520, %v527
    %v529 = vmul.f32 %v524, %v178
    %v530 = vmul.f32 %v524, %v179
    %v531 = vmul.f32 %v528, %v180
    %v532 = vmul.f32 %v528, %v181
    %v533 = vsel %vm182, %v529, 0.0
    %534 = vadd.xlane.f32.xlu0 %v533
    %v535 = vpop.xlane.xlu0 %534
    %v536 = vsel %vm182, %v530, 0.0
    %537 = vadd.xlane.f32.xlu0 %v536
    %v538 = vpop.xlane.xlu0 %537
    %v539 = vsel %vm182, %v531, 0.0
    %540 = vadd.xlane.f32.xlu0 %v539
    %v541 = vpop.xlane.xlu0 %540
    %v542 = vsel %vm182, %v532, 0.0
    %543 = vadd.xlane.f32.xlu0 %v542
    %v544 = vpop.xlane.xlu0 %543
    %v545 = vmul.f32 %v535, %v535
    %v546 = vmul.f32 %v538, %v538
    %v547 = vmul.f32 %v541, %v541
    %v548 = vmul.f32 %v544, %v544
    %v553 = vlaneseq
    %v554 = vshrl.u32 %v553, 7
    %v555 = vsub.s32 %v208, %v554
    %v556 = vrot.slane %v545, %v555
    %v557 = vlaneseq
    %v558 = vshrl.u32 %v557, 7
    %v559 = vsub.s32 %v213, %v558
    %v560 = vrot.slane %v546, %v559
    %v561 = vsel %vm218, %v560, %v556
    %v562 = vlaneseq
    %v563 = vshrl.u32 %v562, 7
    %v564 = vsub.s32 %v208, %v563
    %v565 = vrot.slane %v547, %v564
    %v566 = vlaneseq
    %v567 = vshrl.u32 %v566, 7
    %v568 = vsub.s32 %v213, %v567
    %v569 = vrot.slane %v548, %v568
    %v570 = vsel %vm218, %v569, %v565
    %v571 = vsel %vm229, %v570, %v561
    %v573 = vsel %vm232, %v571, 0.0
    %574 = vadd.xlane.f32.xlu0 %v573
    %v575 = vpop.xlane.xlu0 %574
    %v576 = vadd.f32 %v575, 1.0
    %v577 = vrcp.pop %v576
    %v578 = vmul.f32 %v575, %v577
    %v583 = vlaneseq
    %v584 = vshrl.u32 %v583, 7
    %v585 = vsub.s32 %v208, %v584
    %v586 = vrot.slane %v535, %v585
    %v587 = vlaneseq
    %v588 = vshrl.u32 %v587, 7
    %v589 = vsub.s32 %v213, %v588
    %v590 = vrot.slane %v538, %v589
    %v591 = vsel %vm218, %v590, %v586
    %v592 = vlaneseq
    %v593 = vshrl.u32 %v592, 7
    %v594 = vsub.s32 %v208, %v593
    %v595 = vrot.slane %v541, %v594
    %v596 = vlaneseq
    %v597 = vshrl.u32 %v596, 7
    %v598 = vsub.s32 %v213, %v597
    %v599 = vrot.slane %v544, %v598
    %v600 = vsel %vm218, %v599, %v595
    %v601 = vsel %vm229, %v600, %v591
    %v603 = vmul.f32 %v578, %v601
    %v604 = vrsqrt.pop %v575
    %v605 = vmul.f32 %v575, %v604
    %vm606 = vcmp.eq.f32.partialorder %v575, inf
    %v607 = vsel %vm606, %v575, %v605
    %vm608 = vcmp.eq.f32.partialorder %v575, 0.0
    %v609 = vand.u32 %v575, 2147483648
    %v610 = vsel %vm608, %v609, %v607
    %v611 = vrcp.pop %v610
    %v612 = vmul.f32 %v603, %v611
    %s613 = scalar_lea.vmem [#allocation5], 128
    %v614 = vld [vmem:[%s613] sm:$0xff]
    %v615 = vld [vmem:[%s613 + $0x8] sm:$0xff]
    %v616 = vld [vmem:[%s613 + $0x10] sm:$0xff]
    %v617 = vld [vmem:[%s613 + $0x18] sm:$0xff]
    %v618 = vld [vmem:[%s613 + $0x20] sm:$0xff]
    %v619 = vld [vmem:[%s613 + $0x28] sm:$0xff]
    %v620 = vld [vmem:[%s613 + $0x30] sm:$0xff]
    %v621 = vld [vmem:[%s613 + $0x38] sm:$0xff]
    %v622 = vld [vmem:[%s613 + $0x40] sm:$0xff]
    %v623 = vld [vmem:[%s613 + $0x48] sm:$0xff]
    %v624 = vld [vmem:[%s613 + $0x50] sm:$0xff]
    %v625 = vld [vmem:[%s613 + $0x58] sm:$0xff]
    %v626 = vld [vmem:[%s613 + $0x60] sm:$0xff]
    %v627 = vld [vmem:[%s613 + $0x68] sm:$0xff]
    %v628 = vld [vmem:[%s613 + $0x70] sm:$0xff]
    %v629 = vld [vmem:[%s613 + $0x78] sm:$0xff]
    %v630 = vmul.f32 %v61, %v614
    %v631 = vmul.f32 %v61, %v615
    %v632 = vmul.f32 %v65, %v614
    %v633 = vmul.f32 %v65, %v615
    %v634 = vmul.f32 %v73, %v616
    %v635 = vmul.f32 %v73, %v617
    %v636 = vmul.f32 %v77, %v616
    %v637 = vmul.f32 %v77, %v617
    %v638 = vadd.f32 %v630, %v634
    %v639 = vadd.f32 %v631, %v635
    %v640 = vadd.f32 %v632, %v636
    %v641 = vadd.f32 %v633, %v637
    %v642 = vmul.f32 %v89, %v618
    %v643 = vmul.f32 %v89, %v619
    %v644 = vmul.f32 %v93, %v618
    %v645 = vmul.f32 %v93, %v619
    %v646 = vadd.f32 %v638, %v642
    %v647 = vadd.f32 %v639, %v643
    %v648 = vadd.f32 %v640, %v644
    %v649 = vadd.f32 %v641, %v645
    %v650 = vmul.f32 %v105, %v620
    %v651 = vmul.f32 %v105, %v621
    %v652 = vmul.f32 %v109, %v620
    %v653 = vmul.f32 %v109, %v621
    %v654 = vadd.f32 %v646, %v650
    %v655 = vadd.f32 %v647, %v651
    %v656 = vadd.f32 %v648, %v652
    %v657 = vadd.f32 %v649, %v653
    %v658 = vmul.f32 %v121, %v622
    %v659 = vmul.f32 %v121, %v623
    %v660 = vmul.f32 %v125, %v622
    %v661 = vmul.f32 %v125, %v623
    %v662 = vadd.f32 %v654, %v658
    %v663 = vadd.f32 %v655, %v659
    %v664 = vadd.f32 %v656, %v660
    %v665 = vadd.f32 %v657, %v661
    %v666 = vmul.f32 %v137, %v624
    %v667 = vmul.f32 %v137, %v625
    %v668 = vmul.f32 %v141, %v624
    %v669 = vmul.f32 %v141, %v625
    %v670 = vadd.f32 %v662, %v666
    %v671 = vadd.f32 %v663, %v667
    %v672 = vadd.f32 %v664, %v668
    %v673 = vadd.f32 %v665, %v669
    %v674 = vmul.f32 %v153, %v626
    %v675 = vmul.f32 %v153, %v627
    %v676 = vmul.f32 %v157, %v626
    %v677 = vmul.f32 %v157, %v627
    %v678 = vadd.f32 %v670, %v674
    %v679 = vadd.f32 %v671, %v675
    %v680 = vadd.f32 %v672, %v676
    %v681 = vadd.f32 %v673, %v677
    %v682 = vmul.f32 %v169, %v628
    %v683 = vmul.f32 %v169, %v629
    %v684 = vmul.f32 %v173, %v628
    %v685 = vmul.f32 %v173, %v629
    %v686 = vadd.f32 %v678, %v682
    %v687 = vadd.f32 %v679, %v683
    %v688 = vadd.f32 %v680, %v684
    %v689 = vadd.f32 %v681, %v685
    %v690 = vsel %vm182, %v686, 0.0
    %691 = vadd.xlane.f32.xlu0 %v690
    %v692 = vpop.xlane.xlu0 %691
    %v693 = vsel %vm182, %v687, 0.0
    %694 = vadd.xlane.f32.xlu0 %v693
    %v695 = vpop.xlane.xlu0 %694
    %v696 = vsel %vm182, %v688, 0.0
    %697 = vadd.xlane.f32.xlu0 %v696
    %v698 = vpop.xlane.xlu0 %697
    %v699 = vsel %vm182, %v689, 0.0
    %700 = vadd.xlane.f32.xlu0 %v699
    %v701 = vpop.xlane.xlu0 %700
    %v702 = vmul.f32 %v692, 0.0625
    %v703 = vmul.f32 %v695, 0.0625
    %v704 = vmul.f32 %v698, 0.0625
    %v705 = vmul.f32 %v701, 0.0625
    %v706 = vmul.f32 %v702, %v702
    %v707 = vmul.f32 %v703, %v703
    %v708 = vmul.f32 %v704, %v704
    %v709 = vmul.f32 %v705, %v705
    %v714 = vlaneseq
    %v715 = vshrl.u32 %v714, 7
    %v716 = vsub.s32 %v208, %v715
    %v717 = vrot.slane %v706, %v716
    %v718 = vlaneseq
    %v719 = vshrl.u32 %v718, 7
    %v720 = vsub.s32 %v213, %v719
    %v721 = vrot.slane %v707, %v720
    %v722 = vsel %vm218, %v721, %v717
    %v723 = vlaneseq
    %v724 = vshrl.u32 %v723, 7
    %v725 = vsub.s32 %v208, %v724
    %v726 = vrot.slane %v708, %v725
    %v727 = vlaneseq
    %v728 = vshrl.u32 %v727, 7
    %v729 = vsub.s32 %v213, %v728
    %v730 = vrot.slane %v709, %v729
    %v731 = vsel %vm218, %v730, %v726
    %v732 = vsel %vm229, %v731, %v722
    %v734 = vsel %vm232, %v732, 0.0
    %735 = vadd.xlane.f32.xlu0 %v734
    %v736 = vpop.xlane.xlu0 %735
    %v737 = vadd.f32 %v736, 1.0
    %v738 = vrcp.pop %v737
    %v739 = vmul.f32 %v736, %v738
    %v744 = vlaneseq
    %v745 = vshrl.u32 %v744, 7
    %v746 = vsub.s32 %v208, %v745
    %v747 = vrot.slane %v702, %v746
    %v748 = vlaneseq
    %v749 = vshrl.u32 %v748, 7
    %v750 = vsub.s32 %v213, %v749
    %v751 = vrot.slane %v703, %v750
    %v752 = vsel %vm218, %v751, %v747
    %v753 = vlaneseq
    %v754 = vshrl.u32 %v753, 7
    %v755 = vsub.s32 %v208, %v754
    %v756 = vrot.slane %v704, %v755
    %v757 = vlaneseq
    %v758 = vshrl.u32 %v757, 7
    %v759 = vsub.s32 %v213, %v758
    %v760 = vrot.slane %v705, %v759
    %v761 = vsel %vm218, %v760, %v756
    %v762 = vsel %vm229, %v761, %v752
    %v764 = vmul.f32 %v739, %v762
    %v765 = vrsqrt.pop %v736
    %v766 = vmul.f32 %v736, %v765
    %vm767 = vcmp.eq.f32.partialorder %v736, inf
    %v768 = vsel %vm767, %v736, %v766
    %vm769 = vcmp.eq.f32.partialorder %v736, 0.0
    %v770 = vand.u32 %v736, 2147483648
    %v771 = vsel %vm769, %v770, %v768
    %v772 = vrcp.pop %v771
    %v773 = vmul.f32 %v764, %v772
    %v774 = vlaneseq
    %v775 = vshrl.u32 %v774, 7
    %v776 = vsub.s32 0, %v775
    %v777 = vrot.slane %v773, %v776
    %779 = vbcast.lane.b32.xlu0 %v777, 256
    %v780 = vpop.permute.xlu0 %779
    %s782 = sor.u32 256, 8
    %783 = vbcast.lane.b32.xlu0 %v777, %s782
    %v784 = vpop.permute.xlu0 %783
    %v785 = vlaneseq
    %v786 = vshrl.u32 %v785, 7
    %v787 = vsub.s32 1, %v786
    %v788 = vrot.slane %v773, %v787
    %790 = vbcast.lane.b32.xlu0 %v788, 256
    %v791 = vpop.permute.xlu0 %790
    %s793 = sor.u32 256, 8
    %794 = vbcast.lane.b32.xlu0 %v788, %s793
    %v795 = vpop.permute.xlu0 %794
    %v796 = vmul.f32 %v686, %v780
    %v797 = vmul.f32 %v687, %v784
    %v798 = vmul.f32 %v688, %v791
    %v799 = vmul.f32 %v689, %v795
    %v800 = vsel %vm182, %v796, 0.0
    %v801 = vsel %vm182, %v797, 0.0
    %v802 = vadd.f32 %v800, %v801
    %v803 = vrot.slane %v802, 4
    %v804 = vadd.f32 %v802, %v803
    %v805 = vrot.slane %v804, 2
    %v806 = vadd.f32 %v804, %v805
    %v807 = vrot.slane %v806, 1
    %v808 = vadd.f32 %v806, %v807
    %v809 = vsel %vm182, %v798, 0.0
    %v810 = vsel %vm182, %v799, 0.0
    %v811 = vadd.f32 %v809, %v810
    %v812 = vrot.slane %v811, 4
    %v813 = vadd.f32 %v811, %v812
    %v814 = vrot.slane %v813, 2
    %v815 = vadd.f32 %v813, %v814
    %v816 = vrot.slane %v815, 1
    %v817 = vadd.f32 %v815, %v816
    %v820 = vsel %vm229, %v817, %v808
    %v822 = vsel %vm232, %v820, -inf
    %823 = vmax.xlane.f32.xlu0 %v822
    %v824 = vpop.xlane.xlu0 %823
    %v826 = vrot.slane %v824, 1
    %v829 = vsub.f32 %v808, %v824
    %v830 = vsub.f32 %v817, %v826
    %v831 = vmul.f32 %v829, 1.442695
    %v832 = vpow.pop %v831
    %v833 = vmul.f32 %v830, 1.442695
    %v834 = vpow.pop %v833
    %v837 = vrot.slane %v834, 7
    %v838 = vsel %vm229, %v837, %v832
    %v840 = vsel %vm232, %v838, 0.0
    %841 = vadd.xlane.f32.xlu0 %v840
    %v842 = vpop.xlane.xlu0 %841
    %v843 = vrcp.pop %v842
    %v844 = vmul.f32 1.0, %v843
    %v846 = vrot.slane %v844, 1
    %v849 = vmul.f32 %v832, %v844
    %v850 = vmul.f32 %v834, %v846
    %v851 = vlaneseq
    %v852 = vshrl.u32 %v851, 7
    %v853 = vsub.s32 0, %v852
    %v854 = vrot.slane %v849, %v853
    %v855 = vlaneseq
    %v856 = vshrl.u32 %v855, 7
    %v857 = vsub.s32 0, %v856
    %v858 = vrot.slane %v850, %v857
    %v859 = vmul.f32 %v854, %v686
    %v860 = vmul.f32 %v854, %v687
    %v861 = vmul.f32 %v858, %v688
    %v862 = vmul.f32 %v858, %v689
    %v863 = vsel %vm182, %v859, 0.0
    %864 = vadd.xlane.f32.xlu0 %v863
    %v865 = vpop.xlane.xlu0 %864
    %v866 = vsel %vm182, %v860, 0.0
    %867 = vadd.xlane.f32.xlu0 %v866
    %v868 = vpop.xlane.xlu0 %867
    %v869 = vsel %vm182, %v861, 0.0
    %870 = vadd.xlane.f32.xlu0 %v869
    %v871 = vpop.xlane.xlu0 %870
    %v872 = vsel %vm182, %v862, 0.0
    %873 = vadd.xlane.f32.xlu0 %v872
    %v874 = vpop.xlane.xlu0 %873
    %v875 = vmul.f32 %v865, %v865
    %v876 = vmul.f32 %v868, %v868
    %v877 = vmul.f32 %v871, %v871
    %v878 = vmul.f32 %v874, %v874
    %v883 = vlaneseq
    %v884 = vshrl.u32 %v883, 7
    %v885 = vsub.s32 %v208, %v884
    %v886 = vrot.slane %v875, %v885
    %v887 = vlaneseq
    %v888 = vshrl.u32 %v887, 7
    %v889 = vsub.s32 %v213, %v888
    %v890 = vrot.slane %v876, %v889
    %v891 = vsel %vm218, %v890, %v886
    %v892 = vlaneseq
    %v893 = vshrl.u32 %v892, 7
    %v894 = vsub.s32 %v208, %v893
    %v895 = vrot.slane %v877, %v894
    %v896 = vlaneseq
    %v897 = vshrl.u32 %v896, 7
    %v898 = vsub.s32 %v213, %v897
    %v899 = vrot.slane %v878, %v898
    %v900 = vsel %vm218, %v899, %v895
    %v901 = vsel %vm229, %v900, %v891
    %v903 = vsel %vm232, %v901, 0.0
    %904 = vadd.xlane.f32.xlu0 %v903
    %v905 = vpop.xlane.xlu0 %904
    %v906 = vadd.f32 %v905, 1.0
    %v907 = vrcp.pop %v906
    %v908 = vmul.f32 %v905, %v907
    %v913 = vlaneseq
    %v914 = vshrl.u32 %v913, 7
    %v915 = vsub.s32 %v208, %v914
    %v916 = vrot.slane %v865, %v915
    %v917 = vlaneseq
    %v918 = vshrl.u32 %v917, 7
    %v919 = vsub.s32 %v213, %v918
    %v920 = vrot.slane %v868, %v919
    %v921 = vsel %vm218, %v920, %v916
    %v922 = vlaneseq
    %v923 = vshrl.u32 %v922, 7
    %v924 = vsub.s32 %v208, %v923
    %v925 = vrot.slane %v871, %v924
    %v926 = vlaneseq
    %v927 = vshrl.u32 %v926, 7
    %v928 = vsub.s32 %v213, %v927
    %v929 = vrot.slane %v874, %v928
    %v930 = vsel %vm218, %v929, %v925
    %v931 = vsel %vm229, %v930, %v921
    %v933 = vmul.f32 %v908, %v931
    %v934 = vrsqrt.pop %v905
    %v935 = vmul.f32 %v905, %v934
    %vm936 = vcmp.eq.f32.partialorder %v905, inf
    %v937 = vsel %vm936, %v905, %v935
    %vm938 = vcmp.eq.f32.partialorder %v905, 0.0
    %v939 = vand.u32 %v905, 2147483648
    %v940 = vsel %vm938, %v939, %v937
    %v941 = vrcp.pop %v940
    %v942 = vmul.f32 %v933, %v941
    %v943 = vlaneseq
    %v944 = vshrl.u32 %v943, 7
    %v945 = vsub.s32 0, %v944
    %v946 = vrot.slane %v942, %v945
    %948 = vbcast.lane.b32.xlu0 %v946, 256
    %v949 = vpop.permute.xlu0 %948
    %s951 = sor.u32 256, 8
    %952 = vbcast.lane.b32.xlu0 %v946, %s951
    %v953 = vpop.permute.xlu0 %952
    %v954 = vlaneseq
    %v955 = vshrl.u32 %v954, 7
    %v956 = vsub.s32 1, %v955
    %v957 = vrot.slane %v942, %v956
    %959 = vbcast.lane.b32.xlu0 %v957, 256
    %v960 = vpop.permute.xlu0 %959
    %s962 = sor.u32 256, 8
    %963 = vbcast.lane.b32.xlu0 %v957, %s962
    %v964 = vpop.permute.xlu0 %963
    %v965 = vmul.f32 %v686, %v949
    %v966 = vmul.f32 %v687, %v953
    %v967 = vmul.f32 %v688, %v960
    %v968 = vmul.f32 %v689, %v964
    %v969 = vsel %vm182, %v965, 0.0
    %v970 = vsel %vm182, %v966, 0.0
    %v971 = vadd.f32 %v969, %v970
    %v972 = vrot.slane %v971, 4
    %v973 = vadd.f32 %v971, %v972
    %v974 = vrot.slane %v973, 2
    %v975 = vadd.f32 %v973, %v974
    %v976 = vrot.slane %v975, 1
    %v977 = vadd.f32 %v975, %v976
    %v978 = vsel %vm182, %v967, 0.0
    %v979 = vsel %vm182, %v968, 0.0
    %v980 = vadd.f32 %v978, %v979
    %v981 = vrot.slane %v980, 4
    %v982 = vadd.f32 %v980, %v981
    %v983 = vrot.slane %v982, 2
    %v984 = vadd.f32 %v982, %v983
    %v985 = vrot.slane %v984, 1
    %v986 = vadd.f32 %v984, %v985
    %v987 = vadd.f32 %v808, %v977
    %v988 = vadd.f32 %v817, %v986
    %v991 = vsel %vm229, %v988, %v987
    %v993 = vsel %vm232, %v991, -inf
    %994 = vmax.xlane.f32.xlu0 %v993
    %v995 = vpop.xlane.xlu0 %994
    %v997 = vrot.slane %v995, 1
    %v1000 = vsub.f32 %v987, %v995
    %v1001 = vsub.f32 %v988, %v997
    %v1002 = vmul.f32 %v1000, 1.442695
    %v1003 = vpow.pop %v1002
    %v1004 = vmul.f32 %v1001, 1.442695
    %v1005 = vpow.pop %v1004
    %v1008 = vrot.slane %v1005, 7
    %v1009 = vsel %vm229, %v1008, %v1003
    %v1011 = vsel %vm232, %v1009, 0.0
    %1012 = vadd.xlane.f32.xlu0 %v1011
    %v1013 = vpop.xlane.xlu0 %1012
    %v1014 = vrcp.pop %v1013
    %v1015 = vmul.f32 1.0, %v1014
    %v1017 = vrot.slane %v1015, 1
    %v1020 = vmul.f32 %v1003, %v1015
    %v1021 = vmul.f32 %v1005, %v1017
    %v1022 = vlaneseq
    %v1023 = vshrl.u32 %v1022, 7
    %v1024 = vsub.s32 0, %v1023
    %v1025 = vrot.slane %v1020, %v1024
    %v1026 = vlaneseq
    %v1027 = vshrl.u32 %v1026, 7
    %v1028 = vsub.s32 0, %v1027
    %v1029 = vrot.slane %v1021, %v1028
    %v1030 = vmul.f32 %v1025, %v686
    %v1031 = vmul.f32 %v1025, %v687
    %v1032 = vmul.f32 %v1029, %v688
    %v1033 = vmul.f32 %v1029, %v689
    %v1034 = vsel %vm182, %v1030, 0.0
    %1035 = vadd.xlane.f32.xlu0 %v1034
    %v1036 = vpop.xlane.xlu0 %1035
    %v1037 = vsel %vm182, %v1031, 0.0
    %1038 = vadd.xlane.f32.xlu0 %v1037
    %v1039 = vpop.xlane.xlu0 %1038
    %v1040 = vsel %vm182, %v1032, 0.0
    %1041 = vadd.xlane.f32.xlu0 %v1040
    %v1042 = vpop.xlane.xlu0 %1041
    %v1043 = vsel %vm182, %v1033, 0.0
    %1044 = vadd.xlane.f32.xlu0 %v1043
    %v1045 = vpop.xlane.xlu0 %1044
    %v1046 = vmul.f32 %v1036, %v1036
    %v1047 = vmul.f32 %v1039, %v1039
    %v1048 = vmul.f32 %v1042, %v1042
    %v1049 = vmul.f32 %v1045, %v1045
    %v1054 = vlaneseq
    %v1055 = vshrl.u32 %v1054, 7
    %v1056 = vsub.s32 %v208, %v1055
    %v1057 = vrot.slane %v1046, %v1056
    %v1058 = vlaneseq
    %v1059 = vshrl.u32 %v1058, 7
    %v1060 = vsub.s32 %v213, %v1059
    %v1061 = vrot.slane %v1047, %v1060
    %v1062 = vsel %vm218, %v1061, %v1057
    %v1063 = vlaneseq
    %v1064 = vshrl.u32 %v1063, 7
    %v1065 = vsub.s32 %v208, %v1064
    %v1066 = vrot.slane %v1048, %v1065
    %v1067 = vlaneseq
    %v1068 = vshrl.u32 %v1067, 7
    %v1069 = vsub.s32 %v213, %v1068
    %v1070 = vrot.slane %v1049, %v1069
    %v1071 = vsel %vm218, %v1070, %v1066
    %v1072 = vsel %vm229, %v1071, %v1062
    %v1074 = vsel %vm232, %v1072, 0.0
    %1075 = vadd.xlane.f32.xlu0 %v1074
    %v1076 = vpop.xlane.xlu0 %1075
    %v1077 = vadd.f32 %v1076, 1.0
    %v1078 = vrcp.pop %v1077
    %v1079 = vmul.f32 %v1076, %v1078
    %v1084 = vlaneseq
    %v1085 = vshrl.u32 %v1084, 7
    %v1086 = vsub.s32 %v208, %v1085
    %v1087 = vrot.slane %v1036, %v1086
    %v1088 = vlaneseq
    %v1089 = vshrl.u32 %v1088, 7
    %v1090 = vsub.s32 %v213, %v1089
    %v1091 = vrot.slane %v1039, %v1090
    %v1092 = vsel %vm218, %v1091, %v1087
    %v1093 = vlaneseq
    %v1094 = vshrl.u32 %v1093, 7
    %v1095 = vsub.s32 %v208, %v1094
    %v1096 = vrot.slane %v1042, %v1095
    %v1097 = vlaneseq
    %v1098 = vshrl.u32 %v1097, 7
    %v1099 = vsub.s32 %v213, %v1098
    %v1100 = vrot.slane %v1045, %v1099
    %v1101 = vsel %vm218, %v1100, %v1096
    %v1102 = vsel %vm229, %v1101, %v1092
    %v1104 = vmul.f32 %v1079, %v1102
    %v1105 = vrsqrt.pop %v1076
    %v1106 = vmul.f32 %v1076, %v1105
    %vm1107 = vcmp.eq.f32.partialorder %v1076, inf
    %v1108 = vsel %vm1107, %v1076, %v1106
    %vm1109 = vcmp.eq.f32.partialorder %v1076, 0.0
    %v1110 = vand.u32 %v1076, 2147483648
    %v1111 = vsel %vm1109, %v1110, %v1108
    %v1112 = vrcp.pop %v1111
    %v1113 = vmul.f32 %v1104, %v1112
    %s1114 = scalar_lea.vmem [#allocation5], 256
    %v1115 = vld [vmem:[%s1114] sm:$0xff]
    %v1116 = vld [vmem:[%s1114 + $0x8] sm:$0xff]
    %v1117 = vld [vmem:[%s1114 + $0x10] sm:$0xff]
    %v1118 = vld [vmem:[%s1114 + $0x18] sm:$0xff]
    %v1119 = vld [vmem:[%s1114 + $0x20] sm:$0xff]
    %v1120 = vld [vmem:[%s1114 + $0x28] sm:$0xff]
    %v1121 = vld [vmem:[%s1114 + $0x30] sm:$0xff]
    %v1122 = vld [vmem:[%s1114 + $0x38] sm:$0xff]
    %v1123 = vld [vmem:[%s1114 + $0x40] sm:$0xff]
    %v1124 = vld [vmem:[%s1114 + $0x48] sm:$0xff]
    %v1125 = vld [vmem:[%s1114 + $0x50] sm:$0xff]
    %v1126 = vld [vmem:[%s1114 + $0x58] sm:$0xff]
    %v1127 = vld [vmem:[%s1114 + $0x60] sm:$0xff]
    %v1128 = vld [vmem:[%s1114 + $0x68] sm:$0xff]
    %v1129 = vld [vmem:[%s1114 + $0x70] sm:$0xff]
    %v1130 = vld [vmem:[%s1114 + $0x78] sm:$0xff]
    %v1131 = vmul.f32 %v61, %v1115
    %v1132 = vmul.f32 %v61, %v1116
    %v1133 = vmul.f32 %v65, %v1115
    %v1134 = vmul.f32 %v65, %v1116
    %v1135 = vmul.f32 %v73, %v1117
    %v1136 = vmul.f32 %v73, %v1118
    %v1137 = vmul.f32 %v77, %v1117
    %v1138 = vmul.f32 %v77, %v1118
    %v1139 = vadd.f32 %v1131, %v1135
    %v1140 = vadd.f32 %v1132, %v1136
    %v1141 = vadd.f32 %v1133, %v1137
    %v1142 = vadd.f32 %v1134, %v1138
    %v1143 = vmul.f32 %v89, %v1119
    %v1144 = vmul.f32 %v89, %v1120
    %v1145 = vmul.f32 %v93, %v1119
    %v1146 = vmul.f32 %v93, %v1120
    %v1147 = vadd.f32 %v1139, %v1143
    %v1148 = vadd.f32 %v1140, %v1144
    %v1149 = vadd.f32 %v1141, %v1145
    %v1150 = vadd.f32 %v1142, %v1146
    %v1151 = vmul.f32 %v105, %v1121
    %v1152 = vmul.f32 %v105, %v1122
    %v1153 = vmul.f32 %v109, %v1121
    %v1154 = vmul.f32 %v109, %v1122
    %v1155 = vadd.f32 %v1147, %v1151
    %v1156 = vadd.f32 %v1148, %v1152
    %v1157 = vadd.f32 %v1149, %v1153
    %v1158 = vadd.f32 %v1150, %v1154
    %v1159 = vmul.f32 %v121, %v1123
    %v1160 = vmul.f32 %v121, %v1124
    %v1161 = vmul.f32 %v125, %v1123
    %v1162 = vmul.f32 %v125, %v1124
    %v1163 = vadd.f32 %v1155, %v1159
    %v1164 = vadd.f32 %v1156, %v1160
    %v1165 = vadd.f32 %v1157, %v1161
    %v1166 = vadd.f32 %v1158, %v1162
    %v1167 = vmul.f32 %v137, %v1125
    %v1168 = vmul.f32 %v137, %v1126
    %v1169 = vmul.f32 %v141, %v1125
    %v1170 = vmul.f32 %v141, %v1126
    %v1171 = vadd.f32 %v1163, %v1167
    %v1172 = vadd.f32 %v1164, %v1168
    %v1173 = vadd.f32 %v1165, %v1169
    %v1174 = vadd.f32 %v1166, %v1170
    %v1175 = vmul.f32 %v153, %v1127
    %v1176 = vmul.f32 %v153, %v1128
    %v1177 = vmul.f32 %v157, %v1127
    %v1178 = vmul.f32 %v157, %v1128
    %v1179 = vadd.f32 %v1171, %v1175
    %v1180 = vadd.f32 %v1172, %v1176
    %v1181 = vadd.f32 %v1173, %v1177
    %v1182 = vadd.f32 %v1174, %v1178
    %v1183 = vmul.f32 %v169, %v1129
    %v1184 = vmul.f32 %v169, %v1130
    %v1185 = vmul.f32 %v173, %v1129
    %v1186 = vmul.f32 %v173, %v1130
    %v1187 = vadd.f32 %v1179, %v1183
    %v1188 = vadd.f32 %v1180, %v1184
    %v1189 = vadd.f32 %v1181, %v1185
    %v1190 = vadd.f32 %v1182, %v1186
    %v1191 = vsel %vm182, %v1187, 0.0
    %1192 = vadd.xlane.f32.xlu0 %v1191
    %v1193 = vpop.xlane.xlu0 %1192
    %v1194 = vsel %vm182, %v1188, 0.0
    %1195 = vadd.xlane.f32.xlu0 %v1194
    %v1196 = vpop.xlane.xlu0 %1195
    %v1197 = vsel %vm182, %v1189, 0.0
    %1198 = vadd.xlane.f32.xlu0 %v1197
    %v1199 = vpop.xlane.xlu0 %1198
    %v1200 = vsel %vm182, %v1190, 0.0
    %1201 = vadd.xlane.f32.xlu0 %v1200
    %v1202 = vpop.xlane.xlu0 %1201
    %v1203 = vmul.f32 %v1193, 0.0625
    %v1204 = vmul.f32 %v1196, 0.0625
    %v1205 = vmul.f32 %v1199, 0.0625
    %v1206 = vmul.f32 %v1202, 0.0625
    %v1207 = vmul.f32 %v1203, %v1203
    %v1208 = vmul.f32 %v1204, %v1204
    %v1209 = vmul.f32 %v1205, %v1205
    %v1210 = vmul.f32 %v1206, %v1206
    %v1215 = vlaneseq
    %v1216 = vshrl.u32 %v1215, 7
    %v1217 = vsub.s32 %v208, %v1216
    %v1218 = vrot.slane %v1207, %v1217
    %v1219 = vlaneseq
    %v1220 = vshrl.u32 %v1219, 7
    %v1221 = vsub.s32 %v213, %v1220
    %v1222 = vrot.slane %v1208, %v1221
    %v1223 = vsel %vm218, %v1222, %v1218
    %v1224 = vlaneseq
    %v1225 = vshrl.u32 %v1224, 7
    %v1226 = vsub.s32 %v208, %v1225
    %v1227 = vrot.slane %v1209, %v1226
    %v1228 = vlaneseq
    %v1229 = vshrl.u32 %v1228, 7
    %v1230 = vsub.s32 %v213, %v1229
    %v1231 = vrot.slane %v1210, %v1230
    %v1232 = vsel %vm218, %v1231, %v1227
    %v1233 = vsel %vm229, %v1232, %v1223
    %v1235 = vsel %vm232, %v1233, 0.0
    %1236 = vadd.xlane.f32.xlu0 %v1235
    %v1237 = vpop.xlane.xlu0 %1236
    %v1238 = vadd.f32 %v1237, 1.0
    %v1239 = vrcp.pop %v1238
    %v1240 = vmul.f32 %v1237, %v1239
    %v1245 = vlaneseq
    %v1246 = vshrl.u32 %v1245, 7
    %v1247 = vsub.s32 %v208, %v1246
    %v1248 = vrot.slane %v1203, %v1247
    %v1249 = vlaneseq
    %v1250 = vshrl.u32 %v1249, 7
    %v1251 = vsub.s32 %v213, %v1250
    %v1252 = vrot.slane %v1204, %v1251
    %v1253 = vsel %vm218, %v1252, %v1248
    %v1254 = vlaneseq
    %v1255 = vshrl.u32 %v1254, 7
    %v1256 = vsub.s32 %v208, %v1255
    %v1257 = vrot.slane %v1205, %v1256
    %v1258 = vlaneseq
    %v1259 = vshrl.u32 %v1258, 7
    %v1260 = vsub.s32 %v213, %v1259
    %v1261 = vrot.slane %v1206, %v1260
    %v1262 = vsel %vm218, %v1261, %v1257
    %v1263 = vsel %vm229, %v1262, %v1253
    %v1265 = vmul.f32 %v1240, %v1263
    %v1266 = vrsqrt.pop %v1237
    %v1267 = vmul.f32 %v1237, %v1266
    %vm1268 = vcmp.eq.f32.partialorder %v1237, inf
    %v1269 = vsel %vm1268, %v1237, %v1267
    %vm1270 = vcmp.eq.f32.partialorder %v1237, 0.0
    %v1271 = vand.u32 %v1237, 2147483648
    %v1272 = vsel %vm1270, %v1271, %v1269
    %v1273 = vrcp.pop %v1272
    %v1274 = vmul.f32 %v1265, %v1273
    %v1275 = vlaneseq
    %v1276 = vshrl.u32 %v1275, 7
    %v1277 = vsub.s32 0, %v1276
    %v1278 = vrot.slane %v1274, %v1277
    %1280 = vbcast.lane.b32.xlu0 %v1278, 256
    %v1281 = vpop.permute.xlu0 %1280
    %s1283 = sor.u32 256, 8
    %1284 = vbcast.lane.b32.xlu0 %v1278, %s1283
    %v1285 = vpop.permute.xlu0 %1284
    %v1286 = vlaneseq
    %v1287 = vshrl.u32 %v1286, 7
    %v1288 = vsub.s32 1, %v1287
    %v1289 = vrot.slane %v1274, %v1288
    %1291 = vbcast.lane.b32.xlu0 %v1289, 256
    %v1292 = vpop.permute.xlu0 %1291
    %s1294 = sor.u32 256, 8
    %1295 = vbcast.lane.b32.xlu0 %v1289, %s1294
    %v1296 = vpop.permute.xlu0 %1295
    %v1297 = vmul.f32 %v1187, %v1281
    %v1298 = vmul.f32 %v1188, %v1285
    %v1299 = vmul.f32 %v1189, %v1292
    %v1300 = vmul.f32 %v1190, %v1296
    %v1301 = vsel %vm182, %v1297, 0.0
    %v1302 = vsel %vm182, %v1298, 0.0
    %v1303 = vadd.f32 %v1301, %v1302
    %v1304 = vrot.slane %v1303, 4
    %v1305 = vadd.f32 %v1303, %v1304
    %v1306 = vrot.slane %v1305, 2
    %v1307 = vadd.f32 %v1305, %v1306
    %v1308 = vrot.slane %v1307, 1
    %v1309 = vadd.f32 %v1307, %v1308
    %v1310 = vsel %vm182, %v1299, 0.0
    %v1311 = vsel %vm182, %v1300, 0.0
    %v1312 = vadd.f32 %v1310, %v1311
    %v1313 = vrot.slane %v1312, 4
    %v1314 = vadd.f32 %v1312, %v1313
    %v1315 = vrot.slane %v1314, 2
    %v1316 = vadd.f32 %v1314, %v1315
    %v1317 = vrot.slane %v1316, 1
    %v1318 = vadd.f32 %v1316, %v1317
    %v1321 = vsel %vm229, %v1318, %v1309
    %v1323 = vsel %vm232, %v1321, -inf
    %1324 = vmax.xlane.f32.xlu0 %v1323
    %v1325 = vpop.xlane.xlu0 %1324
    %v1327 = vrot.slane %v1325, 1
    %v1330 = vsub.f32 %v1309, %v1325
    %v1331 = vsub.f32 %v1318, %v1327
    %v1332 = vmul.f32 %v1330, 1.442695
    %v1333 = vpow.pop %v1332
    %v1334 = vmul.f32 %v1331, 1.442695
    %v1335 = vpow.pop %v1334
    %v1338 = vrot.slane %v1335, 7
    %v1339 = vsel %vm229, %v1338, %v1333
    %v1341 = vsel %vm232, %v1339, 0.0
    %1342 = vadd.xlane.f32.xlu0 %v1341
    %v1343 = vpop.xlane.xlu0 %1342
    %v1344 = vrcp.pop %v1343
    %v1345 = vmul.f32 1.0, %v1344
    %v1347 = vrot.slane %v1345, 1
    %v1350 = vmul.f32 %v1333, %v1345
    %v1351 = vmul.f32 %v1335, %v1347
    %v1352 = vlaneseq
    %v1353 = vshrl.u32 %v1352, 7
    %v1354 = vsub.s32 0, %v1353
    %v1355 = vrot.slane %v1350, %v1354
    %v1356 = vlaneseq
    %v1357 = vshrl.u32 %v1356, 7
    %v1358 = vsub.s32 0, %v1357
    %v1359 = vrot.slane %v1351, %v1358
    %v1360 = vmul.f32 %v1355, %v1187
    %v1361 = vmul.f32 %v1355, %v1188
    %v1362 = vmul.f32 %v1359, %v1189
    %v1363 = vmul.f32 %v1359, %v1190
    %v1364 = vsel %vm182, %v1360, 0.0
    %1365 = vadd.xlane.f32.xlu0 %v1364
    %v1366 = vpop.xlane.xlu0 %1365
    %v1367 = vsel %vm182, %v1361, 0.0
    %1368 = vadd.xlane.f32.xlu0 %v1367
    %v1369 = vpop.xlane.xlu0 %1368
    %v1370 = vsel %vm182, %v1362, 0.0
    %1371 = vadd.xlane.f32.xlu0 %v1370
    %v1372 = vpop.xlane.xlu0 %1371
    %v1373 = vsel %vm182, %v1363, 0.0
    %1374 = vadd.xlane.f32.xlu0 %v1373
    %v1375 = vpop.xlane.xlu0 %1374
    %v1376 = vmul.f32 %v1366, %v1366
    %v1377 = vmul.f32 %v1369, %v1369
    %v1378 = vmul.f32 %v1372, %v1372
    %v1379 = vmul.f32 %v1375, %v1375
    %v1384 = vlaneseq
    %v1385 = vshrl.u32 %v1384, 7
    %v1386 = vsub.s32 %v208, %v1385
    %v1387 = vrot.slane %v1376, %v1386
    %v1388 = vlaneseq
    %v1389 = vshrl.u32 %v1388, 7
    %v1390 = vsub.s32 %v213, %v1389
    %v1391 = vrot.slane %v1377, %v1390
    %v1392 = vsel %vm218, %v1391, %v1387
    %v1393 = vlaneseq
    %v1394 = vshrl.u32 %v1393, 7
    %v1395 = vsub.s32 %v208, %v1394
    %v1396 = vrot.slane %v1378, %v1395
    %v1397 = vlaneseq
    %v1398 = vshrl.u32 %v1397, 7
    %v1399 = vsub.s32 %v213, %v1398
    %v1400 = vrot.slane %v1379, %v1399
    %v1401 = vsel %vm218, %v1400, %v1396
    %v1402 = vsel %vm229, %v1401, %v1392
    %v1404 = vsel %vm232, %v1402, 0.0
    %1405 = vadd.xlane.f32.xlu0 %v1404
    %v1406 = vpop.xlane.xlu0 %1405
    %v1407 = vadd.f32 %v1406, 1.0
    %v1408 = vrcp.pop %v1407
    %v1409 = vmul.f32 %v1406, %v1408
    %v1414 = vlaneseq
    %v1415 = vshrl.u32 %v1414, 7
    %v1416 = vsub.s32 %v208, %v1415
    %v1417 = vrot.slane %v1366, %v1416
    %v1418 = vlaneseq
    %v1419 = vshrl.u32 %v1418, 7
    %v1420 = vsub.s32 %v213, %v1419
    %v1421 = vrot.slane %v1369, %v1420
    %v1422 = vsel %vm218, %v1421, %v1417
    %v1423 = vlaneseq
    %v1424 = vshrl.u32 %v1423, 7
    %v1425 = vsub.s32 %v208, %v1424
    %v1426 = vrot.slane %v1372, %v1425
    %v1427 = vlaneseq
    %v1428 = vshrl.u32 %v1427, 7
    %v1429 = vsub.s32 %v213, %v1428
    %v1430 = vrot.slane %v1375, %v1429
    %v1431 = vsel %vm218, %v1430, %v1426
    %v1432 = vsel %vm229, %v1431, %v1422
    %v1434 = vmul.f32 %v1409, %v1432
    %v1435 = vrsqrt.pop %v1406
    %v1436 = vmul.f32 %v1406, %v1435
    %vm1437 = vcmp.eq.f32.partialorder %v1406, inf
    %v1438 = vsel %vm1437, %v1406, %v1436
    %vm1439 = vcmp.eq.f32.partialorder %v1406, 0.0
    %v1440 = vand.u32 %v1406, 2147483648
    %v1441 = vsel %vm1439, %v1440, %v1438
    %v1442 = vrcp.pop %v1441
    %v1443 = vmul.f32 %v1434, %v1442
    %v1444 = vlaneseq
    %v1445 = vshrl.u32 %v1444, 7
    %v1446 = vsub.s32 0, %v1445
    %v1447 = vrot.slane %v1443, %v1446
    %1449 = vbcast.lane.b32.xlu0 %v1447, 256
    %v1450 = vpop.permute.xlu0 %1449
    %s1452 = sor.u32 256, 8
    %1453 = vbcast.lane.b32.xlu0 %v1447, %s1452
    %v1454 = vpop.permute.xlu0 %1453
    %v1455 = vlaneseq
    %v1456 = vshrl.u32 %v1455, 7
    %v1457 = vsub.s32 1, %v1456
    %v1458 = vrot.slane %v1443, %v1457
    %1460 = vbcast.lane.b32.xlu0 %v1458, 256
    %v1461 = vpop.permute.xlu0 %1460
    %s1463 = sor.u32 256, 8
    %1464 = vbcast.lane.b32.xlu0 %v1458, %s1463
    %v1465 = vpop.permute.xlu0 %1464
    %v1466 = vmul.f32 %v1187, %v1450
    %v1467 = vmul.f32 %v1188, %v1454
    %v1468 = vmul.f32 %v1189, %v1461
    %v1469 = vmul.f32 %v1190, %v1465
    %v1470 = vsel %vm182, %v1466, 0.0
    %v1471 = vsel %vm182, %v1467, 0.0
    %v1472 = vadd.f32 %v1470, %v1471
    %v1473 = vrot.slane %v1472, 4
    %v1474 = vadd.f32 %v1472, %v1473
    %v1475 = vrot.slane %v1474, 2
    %v1476 = vadd.f32 %v1474, %v1475
    %v1477 = vrot.slane %v1476, 1
    %v1478 = vadd.f32 %v1476, %v1477
    %v1479 = vsel %vm182, %v1468, 0.0
    %v1480 = vsel %vm182, %v1469, 0.0
    %v1481 = vadd.f32 %v1479, %v1480
    %v1482 = vrot.slane %v1481, 4
    %v1483 = vadd.f32 %v1481, %v1482
    %v1484 = vrot.slane %v1483, 2
    %v1485 = vadd.f32 %v1483, %v1484
    %v1486 = vrot.slane %v1485, 1
    %v1487 = vadd.f32 %v1485, %v1486
    %v1488 = vadd.f32 %v1309, %v1478
    %v1489 = vadd.f32 %v1318, %v1487
    %v1492 = vsel %vm229, %v1489, %v1488
    %v1494 = vsel %vm232, %v1492, -inf
    %1495 = vmax.xlane.f32.xlu0 %v1494
    %v1496 = vpop.xlane.xlu0 %1495
    %v1498 = vrot.slane %v1496, 1
    %v1501 = vsub.f32 %v1488, %v1496
    %v1502 = vsub.f32 %v1489, %v1498
    %v1503 = vmul.f32 %v1501, 1.442695
    %v1504 = vpow.pop %v1503
    %v1505 = vmul.f32 %v1502, 1.442695
    %v1506 = vpow.pop %v1505
    %v1509 = vrot.slane %v1506, 7
    %v1510 = vsel %vm229, %v1509, %v1504
    %v1512 = vsel %vm232, %v1510, 0.0
    %1513 = vadd.xlane.f32.xlu0 %v1512
    %v1514 = vpop.xlane.xlu0 %1513
    %v1515 = vrcp.pop %v1514
    %v1516 = vmul.f32 1.0, %v1515
    %v1518 = vrot.slane %v1516, 1
    %v1521 = vmul.f32 %v1504, %v1516
    %v1522 = vmul.f32 %v1506, %v1518
    %v1523 = vlaneseq
    %v1524 = vshrl.u32 %v1523, 7
    %v1525 = vsub.s32 0, %v1524
    %v1526 = vrot.slane %v1521, %v1525
    %v1527 = vlaneseq
    %v1528 = vshrl.u32 %v1527, 7
    %v1529 = vsub.s32 0, %v1528
    %v1530 = vrot.slane %v1522, %v1529
    %v1531 = vmul.f32 %v1526, %v1187
    %v1532 = vmul.f32 %v1526, %v1188
    %v1533 = vmul.f32 %v1530, %v1189
    %v1534 = vmul.f32 %v1530, %v1190
    %v1535 = vsel %vm182, %v1531, 0.0
    %1536 = vadd.xlane.f32.xlu0 %v1535
    %v1537 = vpop.xlane.xlu0 %1536
    %v1538 = vsel %vm182, %v1532, 0.0
    %1539 = vadd.xlane.f32.xlu0 %v1538
    %v1540 = vpop.xlane.xlu0 %1539
    %v1541 = vsel %vm182, %v1533, 0.0
    %1542 = vadd.xlane.f32.xlu0 %v1541
    %v1543 = vpop.xlane.xlu0 %1542
    %v1544 = vsel %vm182, %v1534, 0.0
    %1545 = vadd.xlane.f32.xlu0 %v1544
    %v1546 = vpop.xlane.xlu0 %1545
    %v1547 = vmul.f32 %v1537, %v1537
    %v1548 = vmul.f32 %v1540, %v1540
    %v1549 = vmul.f32 %v1543, %v1543
    %v1550 = vmul.f32 %v1546, %v1546
    %v1555 = vlaneseq
    %v1556 = vshrl.u32 %v1555, 7
    %v1557 = vsub.s32 %v208, %v1556
    %v1558 = vrot.slane %v1547, %v1557
    %v1559 = vlaneseq
    %v1560 = vshrl.u32 %v1559, 7
    %v1561 = vsub.s32 %v213, %v1560
    %v1562 = vrot.slane %v1548, %v1561
    %v1563 = vsel %vm218, %v1562, %v1558
    %v1564 = vlaneseq
    %v1565 = vshrl.u32 %v1564, 7
    %v1566 = vsub.s32 %v208, %v1565
    %v1567 = vrot.slane %v1549, %v1566
    %v1568 = vlaneseq
    %v1569 = vshrl.u32 %v1568, 7
    %v1570 = vsub.s32 %v213, %v1569
    %v1571 = vrot.slane %v1550, %v1570
    %v1572 = vsel %vm218, %v1571, %v1567
    %v1573 = vsel %vm229, %v1572, %v1563
    %v1575 = vsel %vm232, %v1573, 0.0
    %1576 = vadd.xlane.f32.xlu0 %v1575
    %v1577 = vpop.xlane.xlu0 %1576
    %v1578 = vadd.f32 %v1577, 1.0
    %v1579 = vrcp.pop %v1578
    %v1580 = vmul.f32 %v1577, %v1579
    %v1585 = vlaneseq
    %v1586 = vshrl.u32 %v1585, 7
    %v1587 = vsub.s32 %v208, %v1586
    %v1588 = vrot.slane %v1537, %v1587
    %v1589 = vlaneseq
    %v1590 = vshrl.u32 %v1589, 7
    %v1591 = vsub.s32 %v213, %v1590
    %v1592 = vrot.slane %v1540, %v1591
    %v1593 = vsel %vm218, %v1592, %v1588
    %v1594 = vlaneseq
    %v1595 = vshrl.u32 %v1594, 7
    %v1596 = vsub.s32 %v208, %v1595
    %v1597 = vrot.slane %v1543, %v1596
    %v1598 = vlaneseq
    %v1599 = vshrl.u32 %v1598, 7
    %v1600 = vsub.s32 %v213, %v1599
    %v1601 = vrot.slane %v1546, %v1600
    %v1602 = vsel %vm218, %v1601, %v1597
    %v1603 = vsel %vm229, %v1602, %v1593
    %v1605 = vmul.f32 %v1580, %v1603
    %v1606 = vrsqrt.pop %v1577
    %v1607 = vmul.f32 %v1577, %v1606
    %vm1608 = vcmp.eq.f32.partialorder %v1577, inf
    %v1609 = vsel %vm1608, %v1577, %v1607
    %vm1610 = vcmp.eq.f32.partialorder %v1577, 0.0
    %v1611 = vand.u32 %v1577, 2147483648
    %v1612 = vsel %vm1610, %v1611, %v1609
    %v1613 = vrcp.pop %v1612
    %v1614 = vmul.f32 %v1605, %v1613
    %s1615 = scalar_lea.vmem [#allocation5], 384
    %v1616 = vld [vmem:[%s1615] sm:$0xff]
    %v1617 = vld [vmem:[%s1615 + $0x8] sm:$0xff]
    %v1618 = vld [vmem:[%s1615 + $0x10] sm:$0xff]
    %v1619 = vld [vmem:[%s1615 + $0x18] sm:$0xff]
    %v1620 = vld [vmem:[%s1615 + $0x20] sm:$0xff]
    %v1621 = vld [vmem:[%s1615 + $0x28] sm:$0xff]
    %v1622 = vld [vmem:[%s1615 + $0x30] sm:$0xff]
    %v1623 = vld [vmem:[%s1615 + $0x38] sm:$0xff]
    %v1624 = vld [vmem:[%s1615 + $0x40] sm:$0xff]
    %v1625 = vld [vmem:[%s1615 + $0x48] sm:$0xff]
    %v1626 = vld [vmem:[%s1615 + $0x50] sm:$0xff]
    %v1627 = vld [vmem:[%s1615 + $0x58] sm:$0xff]
    %v1628 = vld [vmem:[%s1615 + $0x60] sm:$0xff]
    %v1629 = vld [vmem:[%s1615 + $0x68] sm:$0xff]
    %v1630 = vld [vmem:[%s1615 + $0x70] sm:$0xff]
    %v1631 = vld [vmem:[%s1615 + $0x78] sm:$0xff]
    %v1632 = vmul.f32 %v61, %v1616
    %v1633 = vmul.f32 %v61, %v1617
    %v1634 = vmul.f32 %v65, %v1616
    %v1635 = vmul.f32 %v65, %v1617
    %v1636 = vmul.f32 %v73, %v1618
    %v1637 = vmul.f32 %v73, %v1619
    %v1638 = vmul.f32 %v77, %v1618
    %v1639 = vmul.f32 %v77, %v1619
    %v1640 = vadd.f32 %v1632, %v1636
    %v1641 = vadd.f32 %v1633, %v1637
    %v1642 = vadd.f32 %v1634, %v1638
    %v1643 = vadd.f32 %v1635, %v1639
    %v1644 = vmul.f32 %v89, %v1620
    %v1645 = vmul.f32 %v89, %v1621
    %v1646 = vmul.f32 %v93, %v1620
    %v1647 = vmul.f32 %v93, %v1621
    %v1648 = vadd.f32 %v1640, %v1644
    %v1649 = vadd.f32 %v1641, %v1645
    %v1650 = vadd.f32 %v1642, %v1646
    %v1651 = vadd.f32 %v1643, %v1647
    %v1652 = vmul.f32 %v105, %v1622
    %v1653 = vmul.f32 %v105, %v1623
    %v1654 = vmul.f32 %v109, %v1622
    %v1655 = vmul.f32 %v109, %v1623
    %v1656 = vadd.f32 %v1648, %v1652
    %v1657 = vadd.f32 %v1649, %v1653
    %v1658 = vadd.f32 %v1650, %v1654
    %v1659 = vadd.f32 %v1651, %v1655
    %v1660 = vmul.f32 %v121, %v1624
    %v1661 = vmul.f32 %v121, %v1625
    %v1662 = vmul.f32 %v125, %v1624
    %v1663 = vmul.f32 %v125, %v1625
    %v1664 = vadd.f32 %v1656, %v1660
    %v1665 = vadd.f32 %v1657, %v1661
    %v1666 = vadd.f32 %v1658, %v1662
    %v1667 = vadd.f32 %v1659, %v1663
    %v1668 = vmul.f32 %v137, %v1626
    %v1669 = vmul.f32 %v137, %v1627
    %v1670 = vmul.f32 %v141, %v1626
    %v1671 = vmul.f32 %v141, %v1627
    %v1672 = vadd.f32 %v1664, %v1668
    %v1673 = vadd.f32 %v1665, %v1669
    %v1674 = vadd.f32 %v1666, %v1670
    %v1675 = vadd.f32 %v1667, %v1671
    %v1676 = vmul.f32 %v153, %v1628
    %v1677 = vmul.f32 %v153, %v1629
    %v1678 = vmul.f32 %v157, %v1628
    %v1679 = vmul.f32 %v157, %v1629
    %v1680 = vadd.f32 %v1672, %v1676
    %v1681 = vadd.f32 %v1673, %v1677
    %v1682 = vadd.f32 %v1674, %v1678
    %v1683 = vadd.f32 %v1675, %v1679
    %v1684 = vmul.f32 %v169, %v1630
    %v1685 = vmul.f32 %v169, %v1631
    %v1686 = vmul.f32 %v173, %v1630
    %v1687 = vmul.f32 %v173, %v1631
    %v1688 = vadd.f32 %v1680, %v1684
    %v1689 = vadd.f32 %v1681, %v1685
    %v1690 = vadd.f32 %v1682, %v1686
    %v1691 = vadd.f32 %v1683, %v1687
    %v1692 = vsel %vm182, %v1688, 0.0
    %1693 = vadd.xlane.f32.xlu0 %v1692
    %v1694 = vpop.xlane.xlu0 %1693
    %v1695 = vsel %vm182, %v1689, 0.0
    %1696 = vadd.xlane.f32.xlu0 %v1695
    %v1697 = vpop.xlane.xlu0 %1696
    %v1698 = vsel %vm182, %v1690, 0.0
    %1699 = vadd.xlane.f32.xlu0 %v1698
    %v1700 = vpop.xlane.xlu0 %1699
    %v1701 = vsel %vm182, %v1691, 0.0
    %1702 = vadd.xlane.f32.xlu0 %v1701
    %v1703 = vpop.xlane.xlu0 %1702
    %v1704 = vmul.f32 %v1694, 0.0625
    %v1705 = vmul.f32 %v1697, 0.0625
    %v1706 = vmul.f32 %v1700, 0.0625
    %v1707 = vmul.f32 %v1703, 0.0625
    %v1708 = vmul.f32 %v1704, %v1704
    %v1709 = vmul.f32 %v1705, %v1705
    %v1710 = vmul.f32 %v1706, %v1706
    %v1711 = vmul.f32 %v1707, %v1707
    %v1716 = vlaneseq
    %v1717 = vshrl.u32 %v1716, 7
    %v1718 = vsub.s32 %v208, %v1717
    %v1719 = vrot.slane %v1708, %v1718
    %v1720 = vlaneseq
    %v1721 = vshrl.u32 %v1720, 7
    %v1722 = vsub.s32 %v213, %v1721
    %v1723 = vrot.slane %v1709, %v1722
    %v1724 = vsel %vm218, %v1723, %v1719
    %v1725 = vlaneseq
    %v1726 = vshrl.u32 %v1725, 7
    %v1727 = vsub.s32 %v208, %v1726
    %v1728 = vrot.slane %v1710, %v1727
    %v1729 = vlaneseq
    %v1730 = vshrl.u32 %v1729, 7
    %v1731 = vsub.s32 %v213, %v1730
    %v1732 = vrot.slane %v1711, %v1731
    %v1733 = vsel %vm218, %v1732, %v1728
    %v1734 = vsel %vm229, %v1733, %v1724
    %v1736 = vsel %vm232, %v1734, 0.0
    %1737 = vadd.xlane.f32.xlu0 %v1736
    %v1738 = vpop.xlane.xlu0 %1737
    %v1739 = vadd.f32 %v1738, 1.0
    %v1740 = vrcp.pop %v1739
    %v1741 = vmul.f32 %v1738, %v1740
    %v1746 = vlaneseq
    %v1747 = vshrl.u32 %v1746, 7
    %v1748 = vsub.s32 %v208, %v1747
    %v1749 = vrot.slane %v1704, %v1748
    %v1750 = vlaneseq
    %v1751 = vshrl.u32 %v1750, 7
    %v1752 = vsub.s32 %v213, %v1751
    %v1753 = vrot.slane %v1705, %v1752
    %v1754 = vsel %vm218, %v1753, %v1749
    %v1755 = vlaneseq
    %v1756 = vshrl.u32 %v1755, 7
    %v1757 = vsub.s32 %v208, %v1756
    %v1758 = vrot.slane %v1706, %v1757
    %v1759 = vlaneseq
    %v1760 = vshrl.u32 %v1759, 7
    %v1761 = vsub.s32 %v213, %v1760
    %v1762 = vrot.slane %v1707, %v1761
    %v1763 = vsel %vm218, %v1762, %v1758
    %v1764 = vsel %vm229, %v1763, %v1754
    %v1766 = vmul.f32 %v1741, %v1764
    %v1767 = vrsqrt.pop %v1738
    %v1768 = vmul.f32 %v1738, %v1767
    %vm1769 = vcmp.eq.f32.partialorder %v1738, inf
    %v1770 = vsel %vm1769, %v1738, %v1768
    %vm1771 = vcmp.eq.f32.partialorder %v1738, 0.0
    %v1772 = vand.u32 %v1738, 2147483648
    %v1773 = vsel %vm1771, %v1772, %v1770
    %v1774 = vrcp.pop %v1773
    %v1775 = vmul.f32 %v1766, %v1774
    %v1776 = vlaneseq
    %v1777 = vshrl.u32 %v1776, 7
    %v1778 = vsub.s32 0, %v1777
    %v1779 = vrot.slane %v1775, %v1778
    %1781 = vbcast.lane.b32.xlu0 %v1779, 256
    %v1782 = vpop.permute.xlu0 %1781
    %s1784 = sor.u32 256, 8
    %1785 = vbcast.lane.b32.xlu0 %v1779, %s1784
    %v1786 = vpop.permute.xlu0 %1785
    %v1787 = vlaneseq
    %v1788 = vshrl.u32 %v1787, 7
    %v1789 = vsub.s32 1, %v1788
    %v1790 = vrot.slane %v1775, %v1789
    %1792 = vbcast.lane.b32.xlu0 %v1790, 256
    %v1793 = vpop.permute.xlu0 %1792
    %s1795 = sor.u32 256, 8
    %1796 = vbcast.lane.b32.xlu0 %v1790, %s1795
    %v1797 = vpop.permute.xlu0 %1796
    %v1798 = vmul.f32 %v1688, %v1782
    %v1799 = vmul.f32 %v1689, %v1786
    %v1800 = vmul.f32 %v1690, %v1793
    %v1801 = vmul.f32 %v1691, %v1797
    %v1802 = vsel %vm182, %v1798, 0.0
    %v1803 = vsel %vm182, %v1799, 0.0
    %v1804 = vadd.f32 %v1802, %v1803
    %v1805 = vrot.slane %v1804, 4
    %v1806 = vadd.f32 %v1804, %v1805
    %v1807 = vrot.slane %v1806, 2
    %v1808 = vadd.f32 %v1806, %v1807
    %v1809 = vrot.slane %v1808, 1
    %v1810 = vadd.f32 %v1808, %v1809
    %v1811 = vsel %vm182, %v1800, 0.0
    %v1812 = vsel %vm182, %v1801, 0.0
    %v1813 = vadd.f32 %v1811, %v1812
    %v1814 = vrot.slane %v1813, 4
    %v1815 = vadd.f32 %v1813, %v1814
    %v1816 = vrot.slane %v1815, 2
    %v1817 = vadd.f32 %v1815, %v1816
    %v1818 = vrot.slane %v1817, 1
    %v1819 = vadd.f32 %v1817, %v1818
    %v1822 = vsel %vm229, %v1819, %v1810
    %v1824 = vsel %vm232, %v1822, -inf
    %1825 = vmax.xlane.f32.xlu0 %v1824
    %v1826 = vpop.xlane.xlu0 %1825
    %v1828 = vrot.slane %v1826, 1
    %v1831 = vsub.f32 %v1810, %v1826
    %v1832 = vsub.f32 %v1819, %v1828
    %v1833 = vmul.f32 %v1831, 1.442695
    %v1834 = vpow.pop %v1833
    %v1835 = vmul.f32 %v1832, 1.442695
    %v1836 = vpow.pop %v1835
    %v1839 = vrot.slane %v1836, 7
    %v1840 = vsel %vm229, %v1839, %v1834
    %v1842 = vsel %vm232, %v1840, 0.0
    %1843 = vadd.xlane.f32.xlu0 %v1842
    %v1844 = vpop.xlane.xlu0 %1843
    %v1845 = vrcp.pop %v1844
    %v1846 = vmul.f32 1.0, %v1845
    %v1848 = vrot.slane %v1846, 1
    %v1851 = vmul.f32 %v1834, %v1846
    %v1852 = vmul.f32 %v1836, %v1848
    %v1853 = vlaneseq
    %v1854 = vshrl.u32 %v1853, 7
    %v1855 = vsub.s32 0, %v1854
    %v1856 = vrot.slane %v1851, %v1855
    %v1857 = vlaneseq
    %v1858 = vshrl.u32 %v1857, 7
    %v1859 = vsub.s32 0, %v1858
    %v1860 = vrot.slane %v1852, %v1859
    %v1861 = vmul.f32 %v1856, %v1688
    %v1862 = vmul.f32 %v1856, %v1689
    %v1863 = vmul.f32 %v1860, %v1690
    %v1864 = vmul.f32 %v1860, %v1691
    %v1865 = vsel %vm182, %v1861, 0.0
    %1866 = vadd.xlane.f32.xlu0 %v1865
    %v1867 = vpop.xlane.xlu0 %1866
    %v1868 = vsel %vm182, %v1862, 0.0
    %1869 = vadd.xlane.f32.xlu0 %v1868
    %v1870 = vpop.xlane.xlu0 %1869
    %v1871 = vsel %vm182, %v1863, 0.0
    %1872 = vadd.xlane.f32.xlu0 %v1871
    %v1873 = vpop.xlane.xlu0 %1872
    %v1874 = vsel %vm182, %v1864, 0.0
    %1875 = vadd.xlane.f32.xlu0 %v1874
    %v1876 = vpop.xlane.xlu0 %1875
    %v1877 = vmul.f32 %v1867, %v1867
    %v1878 = vmul.f32 %v1870, %v1870
    %v1879 = vmul.f32 %v1873, %v1873
    %v1880 = vmul.f32 %v1876, %v1876
    %v1885 = vlaneseq
    %v1886 = vshrl.u32 %v1885, 7
    %v1887 = vsub.s32 %v208, %v1886
    %v1888 = vrot.slane %v1877, %v1887
    %v1889 = vlaneseq
    %v1890 = vshrl.u32 %v1889, 7
    %v1891 = vsub.s32 %v213, %v1890
    %v1892 = vrot.slane %v1878, %v1891
    %v1893 = vsel %vm218, %v1892, %v1888
    %v1894 = vlaneseq
    %v1895 = vshrl.u32 %v1894, 7
    %v1896 = vsub.s32 %v208, %v1895
    %v1897 = vrot.slane %v1879, %v1896
    %v1898 = vlaneseq
    %v1899 = vshrl.u32 %v1898, 7
    %v1900 = vsub.s32 %v213, %v1899
    %v1901 = vrot.slane %v1880, %v1900
    %v1902 = vsel %vm218, %v1901, %v1897
    %v1903 = vsel %vm229, %v1902, %v1893
    %v1905 = vsel %vm232, %v1903, 0.0
    %1906 = vadd.xlane.f32.xlu0 %v1905
    %v1907 = vpop.xlane.xlu0 %1906
    %v1908 = vadd.f32 %v1907, 1.0
    %v1909 = vrcp.pop %v1908
    %v1910 = vmul.f32 %v1907, %v1909
    %v1915 = vlaneseq
    %v1916 = vshrl.u32 %v1915, 7
    %v1917 = vsub.s32 %v208, %v1916
    %v1918 = vrot.slane %v1867, %v1917
    %v1919 = vlaneseq
    %v1920 = vshrl.u32 %v1919, 7
    %v1921 = vsub.s32 %v213, %v1920
    %v1922 = vrot.slane %v1870, %v1921
    %v1923 = vsel %vm218, %v1922, %v1918
    %v1924 = vlaneseq
    %v1925 = vshrl.u32 %v1924, 7
    %v1926 = vsub.s32 %v208, %v1925
    %v1927 = vrot.slane %v1873, %v1926
    %v1928 = vlaneseq
    %v1929 = vshrl.u32 %v1928, 7
    %v1930 = vsub.s32 %v213, %v1929
    %v1931 = vrot.slane %v1876, %v1930
    %v1932 = vsel %vm218, %v1931, %v1927
    %v1933 = vsel %vm229, %v1932, %v1923
    %v1935 = vmul.f32 %v1910, %v1933
    %v1936 = vrsqrt.pop %v1907
    %v1937 = vmul.f32 %v1907, %v1936
    %vm1938 = vcmp.eq.f32.partialorder %v1907, inf
    %v1939 = vsel %vm1938, %v1907, %v1937
    %vm1940 = vcmp.eq.f32.partialorder %v1907, 0.0
    %v1941 = vand.u32 %v1907, 2147483648
    %v1942 = vsel %vm1940, %v1941, %v1939
    %v1943 = vrcp.pop %v1942
    %v1944 = vmul.f32 %v1935, %v1943
    %v1945 = vlaneseq
    %v1946 = vshrl.u32 %v1945, 7
    %v1947 = vsub.s32 0, %v1946
    %v1948 = vrot.slane %v1944, %v1947
    %1950 = vbcast.lane.b32.xlu0 %v1948, 256
    %v1951 = vpop.permute.xlu0 %1950
    %s1953 = sor.u32 256, 8
    %1954 = vbcast.lane.b32.xlu0 %v1948, %s1953
    %v1955 = vpop.permute.xlu0 %1954
    %v1956 = vlaneseq
    %v1957 = vshrl.u32 %v1956, 7
    %v1958 = vsub.s32 1, %v1957
    %v1959 = vrot.slane %v1944, %v1958
    %1961 = vbcast.lane.b32.xlu0 %v1959, 256
    %v1962 = vpop.permute.xlu0 %1961
    %s1964 = sor.u32 256, 8
    %1965 = vbcast.lane.b32.xlu0 %v1959, %s1964
    %v1966 = vpop.permute.xlu0 %1965
    %v1967 = vmul.f32 %v1688, %v1951
    %v1968 = vmul.f32 %v1689, %v1955
    %v1969 = vmul.f32 %v1690, %v1962
    %v1970 = vmul.f32 %v1691, %v1966
    %v1971 = vsel %vm182, %v1967, 0.0
    %v1972 = vsel %vm182, %v1968, 0.0
    %v1973 = vadd.f32 %v1971, %v1972
    %v1974 = vrot.slane %v1973, 4
    %v1975 = vadd.f32 %v1973, %v1974
    %v1976 = vrot.slane %v1975, 2
    %v1977 = vadd.f32 %v1975, %v1976
    %v1978 = vrot.slane %v1977, 1
    %v1979 = vadd.f32 %v1977, %v1978
    %v1980 = vsel %vm182, %v1969, 0.0
    %v1981 = vsel %vm182, %v1970, 0.0
    %v1982 = vadd.f32 %v1980, %v1981
    %v1983 = vrot.slane %v1982, 4
    %v1984 = vadd.f32 %v1982, %v1983
    %v1985 = vrot.slane %v1984, 2
    %v1986 = vadd.f32 %v1984, %v1985
    %v1987 = vrot.slane %v1986, 1
    %v1988 = vadd.f32 %v1986, %v1987
    %v1989 = vadd.f32 %v1810, %v1979
    %v1990 = vadd.f32 %v1819, %v1988
    %v1993 = vsel %vm229, %v1990, %v1989
    %v1995 = vsel %vm232, %v1993, -inf
    %1996 = vmax.xlane.f32.xlu0 %v1995
    %v1997 = vpop.xlane.xlu0 %1996
    %v1999 = vrot.slane %v1997, 1
    %v2002 = vsub.f32 %v1989, %v1997
    %v2003 = vsub.f32 %v1990, %v1999
    %v2004 = vmul.f32 %v2002, 1.442695
    %v2005 = vpow.pop %v2004
    %v2006 = vmul.f32 %v2003, 1.442695
    %v2007 = vpow.pop %v2006
    %v2010 = vrot.slane %v2007, 7
    %v2011 = vsel %vm229, %v2010, %v2005
    %v2013 = vsel %vm232, %v2011, 0.0
    %2014 = vadd.xlane.f32.xlu0 %v2013
    %v2015 = vpop.xlane.xlu0 %2014
    %v2016 = vrcp.pop %v2015
    %v2017 = vmul.f32 1.0, %v2016
    %v2019 = vrot.slane %v2017, 1
    %v2022 = vmul.f32 %v2005, %v2017
    %v2023 = vmul.f32 %v2007, %v2019
    %v2024 = vlaneseq
    %v2025 = vshrl.u32 %v2024, 7
    %v2026 = vsub.s32 0, %v2025
    %v2027 = vrot.slane %v2022, %v2026
    %v2028 = vlaneseq
    %v2029 = vshrl.u32 %v2028, 7
    %v2030 = vsub.s32 0, %v2029
    %v2031 = vrot.slane %v2023, %v2030
    %v2032 = vmul.f32 %v2027, %v1688
    %v2033 = vmul.f32 %v2027, %v1689
    %v2034 = vmul.f32 %v2031, %v1690
    %v2035 = vmul.f32 %v2031, %v1691
    %v2036 = vsel %vm182, %v2032, 0.0
    %2037 = vadd.xlane.f32.xlu0 %v2036
    %v2038 = vpop.xlane.xlu0 %2037
    %v2039 = vsel %vm182, %v2033, 0.0
    %2040 = vadd.xlane.f32.xlu0 %v2039
    %v2041 = vpop.xlane.xlu0 %2040
    %v2042 = vsel %vm182, %v2034, 0.0
    %2043 = vadd.xlane.f32.xlu0 %v2042
    %v2044 = vpop.xlane.xlu0 %2043
    %v2045 = vsel %vm182, %v2035, 0.0
    %2046 = vadd.xlane.f32.xlu0 %v2045
    %v2047 = vpop.xlane.xlu0 %2046
    %v2048 = vmul.f32 %v2038, %v2038
    %v2049 = vmul.f32 %v2041, %v2041
    %v2050 = vmul.f32 %v2044, %v2044
    %v2051 = vmul.f32 %v2047, %v2047
    %v2056 = vlaneseq
    %v2057 = vshrl.u32 %v2056, 7
    %v2058 = vsub.s32 %v208, %v2057
    %v2059 = vrot.slane %v2048, %v2058
    %v2060 = vlaneseq
    %v2061 = vshrl.u32 %v2060, 7
    %v2062 = vsub.s32 %v213, %v2061
    %v2063 = vrot.slane %v2049, %v2062
    %v2064 = vsel %vm218, %v2063, %v2059
    %v2065 = vlaneseq
    %v2066 = vshrl.u32 %v2065, 7
    %v2067 = vsub.s32 %v208, %v2066
    %v2068 = vrot.slane %v2050, %v2067
    %v2069 = vlaneseq
    %v2070 = vshrl.u32 %v2069, 7
    %v2071 = vsub.s32 %v213, %v2070
    %v2072 = vrot.slane %v2051, %v2071
    %v2073 = vsel %vm218, %v2072, %v2068
    %v2074 = vsel %vm229, %v2073, %v2064
    %v2076 = vsel %vm232, %v2074, 0.0
    %2077 = vadd.xlane.f32.xlu0 %v2076
    %v2078 = vpop.xlane.xlu0 %2077
    %v2079 = vadd.f32 %v2078, 1.0
    %v2080 = vrcp.pop %v2079
    %v2081 = vmul.f32 %v2078, %v2080
    %v2086 = vlaneseq
    %v2087 = vshrl.u32 %v2086, 7
    %v2088 = vsub.s32 %v208, %v2087
    %v2089 = vrot.slane %v2038, %v2088
    %v2090 = vlaneseq
    %v2091 = vshrl.u32 %v2090, 7
    %v2092 = vsub.s32 %v213, %v2091
    %v2093 = vrot.slane %v2041, %v2092
    %v2094 = vsel %vm218, %v2093, %v2089
    %v2095 = vlaneseq
    %v2096 = vshrl.u32 %v2095, 7
    %v2097 = vsub.s32 %v208, %v2096
    %v2098 = vrot.slane %v2044, %v2097
    %v2099 = vlaneseq
    %v2100 = vshrl.u32 %v2099, 7
    %v2101 = vsub.s32 %v213, %v2100
    %v2102 = vrot.slane %v2047, %v2101
    %v2103 = vsel %vm218, %v2102, %v2098
    %v2104 = vsel %vm229, %v2103, %v2094
    %v2106 = vmul.f32 %v2081, %v2104
    %v2107 = vrsqrt.pop %v2078
    %v2108 = vmul.f32 %v2078, %v2107
    %vm2109 = vcmp.eq.f32.partialorder %v2078, inf
    %v2110 = vsel %vm2109, %v2078, %v2108
    %vm2111 = vcmp.eq.f32.partialorder %v2078, 0.0
    %v2112 = vand.u32 %v2078, 2147483648
    %v2113 = vsel %vm2111, %v2112, %v2110
    %v2114 = vrcp.pop %v2113
    %v2115 = vmul.f32 %v2106, %v2114
    %2117 = vrot.lane.b32.xlu0 %v1113, 16
    %v2118 = vpop.permute.xlu0 %2117
    %2121 = vrot.lane.b32.xlu0 %v1614, 32
    %v2122 = vpop.permute.xlu0 %2121
    %2125 = vrot.lane.b32.xlu0 %v2115, 48
    %v2126 = vpop.permute.xlu0 %2125
    %v2128 = vsel %vm182, %v612, %v2118
    %vm2129 = vcmask 261120
    %v2130 = vsel %vm2129, %v2128, %v2122
    %vm2131 = vcmask 392192
    %v2132 = vsel %vm2131, %v2130, %v2126
    %vm2133 = vcmask 517120
    %2134 = vst.msk [vmem:[#allocation7] sm:$0x3] %vm2133, %v2132
    // Predicated region
    $region18: #{tpu_custom_call.1} parent=1 // pred_check
      _
    $region19: #{tpu_custom_call.1} parent=1 // pred_check_branch
      %2136 = sbr.rel (0) target = $region21
    $region20: #{tpu_custom_call.1} parent=1 // pred_region
      %s2138 = ssub.s32 32, 32
      %2139 = vsyncadd [#allocation4], %s2138
      %s2141 = sshll.u32 [#allocation7], 4
      %s2142 = int_to_ptr.vmem [resolvable:$true] %s2141
      %2144 = dma.vmem_to_hbm [thread:$0]  %s2142, 32, %s2, [#allocation4]
    $region21: #{tpu_custom_call.1} parent=1 // pred_fallthru
      _
    // Predicated region
    $region22: #{tpu_custom_call.1} parent=1 // pred_check
      _
    $region23: #{tpu_custom_call.1} parent=1 // pred_check_branch
      %2146 = sbr.rel (0) target = $region25
    $region24: #{tpu_custom_call.1} parent=1 // pred_region
      %2147 = dma.done [#allocation4], 32
    $region25: #{tpu_custom_call.1} parent=1 // pred_fallthru
      _
    %2148 = vsyncpa [#allocation3], 1
    %2149 = vsyncpa [#allocation6], 1
    %2150 = vsyncpa [#allocation4], 1

</llo_original>
